<compile_context>
chip_gen: v6e
topology: v6e:2x2x1
jax: 0.10.0
libtpu: 0.0.40
codegen_flags: <defaults>
</compile_context>

<pallas_src>
from functools import partial

import jax
import jax.numpy as jnp
from jax.experimental import pallas as pl
from jax.experimental.pallas import tpu as pltpu


# ----------------------------------------------------------------------------
# Pallas kernel: fused QKV projection + per-head sequence attention
# ----------------------------------------------------------------------------
def _qkv_attention_kernel(x_ref, w_ref, b_ref, o_ref, *, num_heads):
    """One grid step processes a (bb, S, E) tile of batches end-to-end.

    x_ref : (bb, S, E)   batch tile of tokens (input dtype, e.g. bf16 or f32)
    w_ref : (E, 3E)      fused [Wq^T | Wk^T | Wv^T]
    b_ref : (1, 3E)      fused bias (f32)
    o_ref : (bb, S, E)   output tile
    """
    bb, s, e = x_ref.shape
    d = e // num_heads

    # (1) Fused QKV projection: one (bb*S, E) @ (E, 3E) MXU matmul.
    #     No up-cast of x / W -- bf16 inputs hit the MXU as bf16; f32 accumulate.
    x2 = x_ref[...].reshape(bb * s, e)
    qkv = jnp.dot(x2, w_ref[...], preferred_element_type=jnp.float32)
    qkv = (qkv + b_ref[...]).reshape(bb, s, 3 * e)

    # (2) Per-head attention over the sequence (batched over the batch tile).
    #     PyTorch module applies softmax(q @ k^T) with NO 1/sqrt(D) scaling.
    outs = []
    for h in range(num_heads):  # static unroll; num_heads is small
        lo = h * d
        qh = qkv[:, :, lo:lo + d]                      # (bb, S, D)
        kh = qkv[:, :, e + lo:e + lo + d]              # (bb, S, D)
        vh = qkv[:, :, 2 * e + lo:2 * e + lo + d]      # (bb, S, D)

        att = jnp.einsum('bqd,bkd->bqk', qh, kh,
                         preferred_element_type=jnp.float32)    # (bb, S, S)
        att = att - jnp.max(att, axis=-1, keepdims=True)
        p = jnp.exp(att)
        denom = jnp.sum(p, axis=-1, keepdims=True)
        r = pl.reciprocal(denom, approx=True)          # EUP slot (cheap)
        r = r * (2.0 - denom * r)                      # one Newton step -> ~f32 exact
        out_h = jnp.einsum('bqk,bkd->bqd', p * r, vh,
                           preferred_element_type=jnp.float32)  # (bb, S, D)
        outs.append(out_h)

    # Single lane-dense store of the whole tile.
    o_ref[...] = jnp.concatenate(outs, axis=-1).astype(o_ref.dtype)


def qkv_attention(x, wq, bq, wk, bk, wv, bv, *, num_heads, batch_tile=None):
    """QKVAttention forward. x: (B, S, E); w*: (E, E) PyTorch (out,in); b*: (E,)."""
    b, s, e = x.shape
    assert e % num_heads == 0

    # PyTorch Linear is y = x @ W^T + b; pre-transpose and fuse Q/K/V into one
    # (E, 3E) weight and (1, 3E) bias so the kernel does a single matmul.
    w_fused = jnp.concatenate([wq.T, wk.T, wv.T], axis=1).astype(x.dtype)
    b_fused = jnp.concatenate([bq, bk, bv]).reshape(1, 3 * e).astype(jnp.float32)

    # Pick the batch tile so each grid step carries ~512 tokens of projection
    # work (amortizes ~0.35us/step overhead and fills the MXU rows).
    if batch_tile is None:
        batch_tile = 1
        for cand in range(1, b + 1):
            if b % cand == 0 and cand * s <= 512:
                batch_tile = cand
    bb = batch_tile
    assert b % bb == 0

    n_tok = b * s
    itemsize = x.dtype.itemsize
    cost = pl.CostEstimate(
        flops=2 * n_tok * e * 3 * e + 4 * n_tok * s * e,
        transcendentals=num_heads * n_tok * s,
        bytes_accessed=(n_tok * e * itemsize            # x
                        + e * 3 * e * itemsize          # fused weight
                        + 3 * e * 4                     # fused bias
                        + n_tok * e * itemsize),        # out
    )

    kernel = partial(_qkv_attention_kernel, num_heads=num_heads)
    out = pl.pallas_call(
        kernel,
        out_shape=jax.ShapeDtypeStruct((b, s, e), x.dtype),
        grid_spec=pltpu.PrefetchScalarGridSpec(
            num_scalar_prefetch=0,
            grid=(b // bb,),
            in_specs=[
                pl.BlockSpec((bb, s, e), lambda i: (i, 0, 0)),      # x tile
                pl.BlockSpec((e, 3 * e), lambda i: (0, 0)),         # fused W
                pl.BlockSpec((1, 3 * e), lambda i: (0, 0)),         # fused b
            ],
            out_specs=pl.BlockSpec((bb, s, e), lambda i: (i, 0, 0)),
        ),
        compiler_params=pltpu.CompilerParams(
            dimension_semantics=("parallel",),
            vmem_limit_bytes=48 * 1024 * 1024,   # headroom under v7x's 64 MiB
        ),
        cost_estimate=cost,
    )(x, w_fused, b_fused)
    return out


# ----------------------------------------------------------------------------
# Hyperbolic / spherical input maps (cheap elementwise pre-transforms, plain JAX)
# ----------------------------------------------------------------------------
# TODO(synk): ToPoincare/FromPoincare source (and args.hyp_c / args.hyp_mode
# from Options().parse()) is not in the spec; standard hyptorch maps
# (expmap0 + ball projection, logmap0) with a fixed curvature are used.
def to_poincare(x, c):
    sqrt_c = jnp.sqrt(jnp.asarray(c, jnp.float32))
    norm = jnp.maximum(jnp.linalg.norm(x, axis=-1, keepdims=True), 1e-5)
    y = jnp.tanh(sqrt_c * norm) * x / (sqrt_c * norm)
    max_norm = (1.0 - 1e-3) / sqrt_c
    y_norm = jnp.maximum(jnp.linalg.norm(y, axis=-1, keepdims=True), 1e-5)
    return jnp.where(y_norm > max_norm, y / y_norm * max_norm, y).astype(x.dtype)


def from_poincare(x, c):
    sqrt_c = jnp.sqrt(jnp.asarray(c, jnp.float32))
    norm = jnp.maximum(jnp.linalg.norm(x, axis=-1, keepdims=True), 1e-5)
    arg = jnp.clip(sqrt_c * norm, -1.0 + 1e-5, 1.0 - 1e-5)
    return (x / norm / sqrt_c * jnp.arctanh(arg)).astype(x.dtype)


def hyp_qkv_attention(x, params, *, num_heads, hyp_mode="ehs", hyp_c=0.1):
    """HypQKVAttention forward: sum of up to three QKVAttention branches."""
    out = jnp.zeros(x.shape, dtype=x.dtype)
    if "e" in hyp_mode:
        out = out + qkv_attention(x, *params["euc"], num_heads=num_heads)
    if "h" in hyp_mode:
        out = out + qkv_attention(to_poincare(x, hyp_c), *params["hyp"],
                                  num_heads=num_heads)
    if "s" in hyp_mode:
        out = out + qkv_attention(from_poincare(x, hyp_c), *params["sph"],
                                  num_heads=num_heads)
    return out


# ----------------------------------------------------------------------------
# Pure-JAX references (match the PyTorch forward exactly)
# ----------------------------------------------------------------------------
def _qkv_attention_ref(x, wq, bq, wk, bk, wv, bv, *, num_heads):
    b, s, e = x.shape
    d = e // num_heads
    q = (x @ wq.T + bq).reshape(b, s, num_heads, d)
    k = (x @ wk.T + bk).reshape(b, s, num_heads, d)
    v = (x @ wv.T + bv).reshape(b, s, num_heads, d)
    q = jnp.transpose(q, (0, 2, 1, 3))
    k = jnp.transpose(k, (0, 2, 1, 3))
    v = jnp.transpose(v, (0, 2, 1, 3))
    att = jax.nn.softmax(q @ jnp.swapaxes(k, -1, -2), axis=-1)  # no 1/sqrt(d)
    out = att @ v
    return jnp.transpose(out, (0, 2, 1, 3)).reshape(b, s, e)


def hyp_qkv_attention_ref(x, params, *, num_heads, hyp_mode="ehs", hyp_c=0.1):
    out = jnp.zeros(x.shape, dtype=x.dtype)
    if "e" in hyp_mode:
        out = out + _qkv_attention_ref(x, *params["euc"], num_heads=num_heads)
    if "h" in hyp_mode:
        out = out + _qkv_attention_ref(to_poincare(x, hyp_c), *params["hyp"],
                                       num_heads=num_heads)
    if "s" in hyp_mode:
        out = out + _qkv_attention_ref(from_poincare(x, hyp_c), *params["sph"],
                                       num_heads=num_heads)
    return out


# ----------------------------------------------------------------------------
if __name__ == "__main__":
    B, S, E, H = 2, 8, 32, 4  # batch, seq, embed_dim, num_heads (head_dim = 8)

    key = jax.random.PRNGKey(0)
    keys = jax.random.split(key, 19)
    x = jax.random.normal(keys[0], (B, S, E), dtype=jnp.float32) * 0.5

    def make_branch(ks):
        scale = 1.0 / jnp.sqrt(E)
        wq = jax.random.normal(ks[0], (E, E), dtype=jnp.float32) * scale
        bq = jax.random.normal(ks[1], (E,), dtype=jnp.float32) * 0.1
        wk = jax.random.normal(ks[2], (E, E), dtype=jnp.float32) * scale
        bk = jax.random.normal(ks[3], (E,), dtype=jnp.float32) * 0.1
        wv = jax.random.normal(ks[4], (E, E), dtype=jnp.float32) * scale
        bv = jax.random.normal(ks[5], (E,), dtype=jnp.float32) * 0.1
        return (wq, bq, wk, bk, wv, bv)

    params = {
        "euc": make_branch(keys[1:7]),
        "hyp": make_branch(keys[7:13]),
        "sph": make_branch(keys[13:19]),
    }

    out = hyp_qkv_attention(x, params, num_heads=H, hyp_mode="ehs", hyp_c=0.1)
    out = jax.block_until_ready(out)

    ref = hyp_qkv_attention_ref(x, params, num_heads=H, hyp_mode="ehs", hyp_c=0.1)
    assert out.shape == (B, S, E)
    err = float(jnp.max(jnp.abs(out - ref)))
    assert err < 1e-3, f"max abs err = {err}"

    print("KERNEL_OK")
</pallas_src>

<mosaic_0001>
module attributes {stable_mosaic.version = 11 : i64} {
  func.func @_qkv_attention_kernel(%arg0: i32, %arg1: memref<2x8x32xf32, #tpu.memory_space<vmem>>, %arg2: memref<32x96xf32, #tpu.memory_space<vmem>>, %arg3: memref<1x96xf32, #tpu.memory_space<vmem>>, %arg4: memref<2x8x32xf32, #tpu.memory_space<vmem>>) attributes {dimension_semantics = [#tpu.dimension_semantics<parallel>], iteration_bounds = array<i64: 1>, scalar_prefetch = 0 : i64, scratch_operands = 0 : i64, tpu.core_type = #tpu.core_type<tc>, window_params = [{transform_indices = @transform_0, window_bounds = array<i64: 2, 8, 32>}, {pipeline_mode = #tpu.pipeline_mode<synchronous>, transform_indices = @transform_1, window_bounds = array<i64: 32, 96>}, {pipeline_mode = #tpu.pipeline_mode<synchronous>, transform_indices = @transform_2, window_bounds = array<i64: 1, 96>}, {transform_indices = @transform_3, window_bounds = array<i64: 2, 8, 32>}]} {
    %c0 = arith.constant 0 : index
    %c0_0 = arith.constant 0 : index
    %c0_1 = arith.constant 0 : index
    %0 = vector.load %arg1[%c0, %c0_0, %c0_1] : memref<2x8x32xf32, #tpu.memory_space<vmem>>, vector<2x8x32xf32>
    %1 = vector.shape_cast %0 : vector<2x8x32xf32> to vector<16x32xf32>
    %c0_2 = arith.constant 0 : index
    %c0_3 = arith.constant 0 : index
    %2 = vector.load %arg2[%c0_2, %c0_3] : memref<32x96xf32, #tpu.memory_space<vmem>>, vector<32x96xf32>
    %cst = arith.constant dense<0.000000e+00> : vector<16x96xf32>
    %3 = tpu.matmul %1, %2, %cst {dimension_numbers = #tpu.dot_dimension_numbers<[1], [0], [0], [1], [0, 0, 1, 1], [], []>} : vector<16x32xf32>, vector<32x96xf32>, vector<16x96xf32> -> vector<16x96xf32>
    %c0_4 = arith.constant 0 : index
    %c0_5 = arith.constant 0 : index
    %4 = vector.load %arg3[%c0_4, %c0_5] : memref<1x96xf32, #tpu.memory_space<vmem>>, vector<1x96xf32>
    %5 = vector.broadcast %4 : vector<1x96xf32> to vector<16x96xf32>
    %6 = arith.addf %3, %5 : vector<16x96xf32>
    %7 = vector.shape_cast %6 : vector<16x96xf32> to vector<2x8x96xf32>
    %8 = vector.extract_strided_slice %7 {offsets = [0, 0, 0], sizes = [2, 8, 8], strides = [1, 1, 1]} : vector<2x8x96xf32> to vector<2x8x8xf32>
    %9 = vector.extract_strided_slice %7 {offsets = [0, 0, 32], sizes = [2, 8, 8], strides = [1, 1, 1]} : vector<2x8x96xf32> to vector<2x8x8xf32>
    %10 = vector.extract_strided_slice %7 {offsets = [0, 0, 64], sizes = [2, 8, 8], strides = [1, 1, 1]} : vector<2x8x96xf32> to vector<2x8x8xf32>
    "tpu.trace_start"() <{level = 10 : i32, message = "bqd,bkd->bqk"}> : () -> ()
    %cst_6 = arith.constant dense<0.000000e+00> : vector<2x8x8xf32>
    %11 = tpu.matmul %8, %9, %cst_6 {dimension_numbers = #tpu.dot_dimension_numbers<[2], [2], [1], [1], [0, 0, 0, 1, 1, 1], [0], [0]>} : vector<2x8x8xf32>, vector<2x8x8xf32>, vector<2x8x8xf32> -> vector<2x8x8xf32>
    "tpu.trace_stop"() : () -> ()
    %cst_7 = arith.constant dense<0xFF800000> : vector<2x8xf32>
    %12 = vector.multi_reduction <maximumf>, %11, %cst_7 [2] : vector<2x8x8xf32> to vector<2x8xf32>
    %13 = vector.shape_cast %12 : vector<2x8xf32> to vector<2x8x1xf32>
    %14 = vector.broadcast %13 : vector<2x8x1xf32> to vector<2x8x8xf32>
    %15 = arith.subf %11, %14 : vector<2x8x8xf32>
    %16 = math.exp %15 : vector<2x8x8xf32>
    %cst_8 = arith.constant dense<0.000000e+00> : vector<2x8xf32>
    %17 = vector.multi_reduction <add>, %16, %cst_8 [2] : vector<2x8x8xf32> to vector<2x8xf32>
    %18 = vector.shape_cast %17 : vector<2x8xf32> to vector<2x8x1xf32>
    %19 = tpu.reciprocal %18 {approx = true} : vector<2x8x1xf32> -> vector<2x8x1xf32>
    %20 = arith.mulf %18, %19 : vector<2x8x1xf32>
    %cst_9 = arith.constant 2.000000e+00 : f32
    %21 = vector.broadcast %cst_9 : f32 to vector<2x8x1xf32>
    %22 = arith.subf %21, %20 : vector<2x8x1xf32>
    %23 = arith.mulf %19, %22 : vector<2x8x1xf32>
    %24 = vector.broadcast %23 : vector<2x8x1xf32> to vector<2x8x8xf32>
    %25 = arith.mulf %16, %24 : vector<2x8x8xf32>
    "tpu.trace_start"() <{level = 10 : i32, message = "bqk,bkd->bqd"}> : () -> ()
    %cst_10 = arith.constant dense<0.000000e+00> : vector<2x8x8xf32>
    %26 = tpu.matmul %25, %10, %cst_10 {dimension_numbers = #tpu.dot_dimension_numbers<[2], [1], [1], [2], [0, 0, 0, 1, 1, 2], [0], [0]>} : vector<2x8x8xf32>, vector<2x8x8xf32>, vector<2x8x8xf32> -> vector<2x8x8xf32>
    "tpu.trace_stop"() : () -> ()
    %27 = vector.extract_strided_slice %7 {offsets = [0, 0, 8], sizes = [2, 8, 8], strides = [1, 1, 1]} : vector<2x8x96xf32> to vector<2x8x8xf32>
    %28 = vector.extract_strided_slice %7 {offsets = [0, 0, 40], sizes = [2, 8, 8], strides = [1, 1, 1]} : vector<2x8x96xf32> to vector<2x8x8xf32>
    %29 = vector.extract_strided_slice %7 {offsets = [0, 0, 72], sizes = [2, 8, 8], strides = [1, 1, 1]} : vector<2x8x96xf32> to vector<2x8x8xf32>
    "tpu.trace_start"() <{level = 10 : i32, message = "bqd,bkd->bqk"}> : () -> ()
    %cst_11 = arith.constant dense<0.000000e+00> : vector<2x8x8xf32>
    %30 = tpu.matmul %27, %28, %cst_11 {dimension_numbers = #tpu.dot_dimension_numbers<[2], [2], [1], [1], [0, 0, 0, 1, 1, 1], [0], [0]>} : vector<2x8x8xf32>, vector<2x8x8xf32>, vector<2x8x8xf32> -> vector<2x8x8xf32>
    "tpu.trace_stop"() : () -> ()
    %cst_12 = arith.constant dense<0xFF800000> : vector<2x8xf32>
    %31 = vector.multi_reduction <maximumf>, %30, %cst_12 [2] : vector<2x8x8xf32> to vector<2x8xf32>
    %32 = vector.shape_cast %31 : vector<2x8xf32> to vector<2x8x1xf32>
    %33 = vector.broadcast %32 : vector<2x8x1xf32> to vector<2x8x8xf32>
    %34 = arith.subf %30, %33 : vector<2x8x8xf32>
    %35 = math.exp %34 : vector<2x8x8xf32>
    %cst_13 = arith.constant dense<0.000000e+00> : vector<2x8xf32>
    %36 = vector.multi_reduction <add>, %35, %cst_13 [2] : vector<2x8x8xf32> to vector<2x8xf32>
    %37 = vector.shape_cast %36 : vector<2x8xf32> to vector<2x8x1xf32>
    %38 = tpu.reciprocal %37 {approx = true} : vector<2x8x1xf32> -> vector<2x8x1xf32>
    %39 = arith.mulf %37, %38 : vector<2x8x1xf32>
    %cst_14 = arith.constant 2.000000e+00 : f32
    %40 = vector.broadcast %cst_14 : f32 to vector<2x8x1xf32>
    %41 = arith.subf %40, %39 : vector<2x8x1xf32>
    %42 = arith.mulf %38, %41 : vector<2x8x1xf32>
    %43 = vector.broadcast %42 : vector<2x8x1xf32> to vector<2x8x8xf32>
    %44 = arith.mulf %35, %43 : vector<2x8x8xf32>
    "tpu.trace_start"() <{level = 10 : i32, message = "bqk,bkd->bqd"}> : () -> ()
    %cst_15 = arith.constant dense<0.000000e+00> : vector<2x8x8xf32>
    %45 = tpu.matmul %44, %29, %cst_15 {dimension_numbers = #tpu.dot_dimension_numbers<[2], [1], [1], [2], [0, 0, 0, 1, 1, 2], [0], [0]>} : vector<2x8x8xf32>, vector<2x8x8xf32>, vector<2x8x8xf32> -> vector<2x8x8xf32>
    "tpu.trace_stop"() : () -> ()
    %46 = vector.extract_strided_slice %7 {offsets = [0, 0, 16], sizes = [2, 8, 8], strides = [1, 1, 1]} : vector<2x8x96xf32> to vector<2x8x8xf32>
    %47 = vector.extract_strided_slice %7 {offsets = [0, 0, 48], sizes = [2, 8, 8], strides = [1, 1, 1]} : vector<2x8x96xf32> to vector<2x8x8xf32>
    %48 = vector.extract_strided_slice %7 {offsets = [0, 0, 80], sizes = [2, 8, 8], strides = [1, 1, 1]} : vector<2x8x96xf32> to vector<2x8x8xf32>
    "tpu.trace_start"() <{level = 10 : i32, message = "bqd,bkd->bqk"}> : () -> ()
    %cst_16 = arith.constant dense<0.000000e+00> : vector<2x8x8xf32>
    %49 = tpu.matmul %46, %47, %cst_16 {dimension_numbers = #tpu.dot_dimension_numbers<[2], [2], [1], [1], [0, 0, 0, 1, 1, 1], [0], [0]>} : vector<2x8x8xf32>, vector<2x8x8xf32>, vector<2x8x8xf32> -> vector<2x8x8xf32>
    "tpu.trace_stop"() : () -> ()
    %cst_17 = arith.constant dense<0xFF800000> : vector<2x8xf32>
    %50 = vector.multi_reduction <maximumf>, %49, %cst_17 [2] : vector<2x8x8xf32> to vector<2x8xf32>
    %51 = vector.shape_cast %50 : vector<2x8xf32> to vector<2x8x1xf32>
    %52 = vector.broadcast %51 : vector<2x8x1xf32> to vector<2x8x8xf32>
    %53 = arith.subf %49, %52 : vector<2x8x8xf32>
    %54 = math.exp %53 : vector<2x8x8xf32>
    %cst_18 = arith.constant dense<0.000000e+00> : vector<2x8xf32>
    %55 = vector.multi_reduction <add>, %54, %cst_18 [2] : vector<2x8x8xf32> to vector<2x8xf32>
    %56 = vector.shape_cast %55 : vector<2x8xf32> to vector<2x8x1xf32>
    %57 = tpu.reciprocal %56 {approx = true} : vector<2x8x1xf32> -> vector<2x8x1xf32>
    %58 = arith.mulf %56, %57 : vector<2x8x1xf32>
    %cst_19 = arith.constant 2.000000e+00 : f32
    %59 = vector.broadcast %cst_19 : f32 to vector<2x8x1xf32>
    %60 = arith.subf %59, %58 : vector<2x8x1xf32>
    %61 = arith.mulf %57, %60 : vector<2x8x1xf32>
    %62 = vector.broadcast %61 : vector<2x8x1xf32> to vector<2x8x8xf32>
    %63 = arith.mulf %54, %62 : vector<2x8x8xf32>
    "tpu.trace_start"() <{level = 10 : i32, message = "bqk,bkd->bqd"}> : () -> ()
    %cst_20 = arith.constant dense<0.000000e+00> : vector<2x8x8xf32>
    %64 = tpu.matmul %63, %48, %cst_20 {dimension_numbers = #tpu.dot_dimension_numbers<[2], [1], [1], [2], [0, 0, 0, 1, 1, 2], [0], [0]>} : vector<2x8x8xf32>, vector<2x8x8xf32>, vector<2x8x8xf32> -> vector<2x8x8xf32>
    "tpu.trace_stop"() : () -> ()
    %65 = vector.extract_strided_slice %7 {offsets = [0, 0, 24], sizes = [2, 8, 8], strides = [1, 1, 1]} : vector<2x8x96xf32> to vector<2x8x8xf32>
    %66 = vector.extract_strided_slice %7 {offsets = [0, 0, 56], sizes = [2, 8, 8], strides = [1, 1, 1]} : vector<2x8x96xf32> to vector<2x8x8xf32>
    %67 = vector.extract_strided_slice %7 {offsets = [0, 0, 88], sizes = [2, 8, 8], strides = [1, 1, 1]} : vector<2x8x96xf32> to vector<2x8x8xf32>
    "tpu.trace_start"() <{level = 10 : i32, message = "bqd,bkd->bqk"}> : () -> ()
    %cst_21 = arith.constant dense<0.000000e+00> : vector<2x8x8xf32>
    %68 = tpu.matmul %65, %66, %cst_21 {dimension_numbers = #tpu.dot_dimension_numbers<[2], [2], [1], [1], [0, 0, 0, 1, 1, 1], [0], [0]>} : vector<2x8x8xf32>, vector<2x8x8xf32>, vector<2x8x8xf32> -> vector<2x8x8xf32>
    "tpu.trace_stop"() : () -> ()
    %cst_22 = arith.constant dense<0xFF800000> : vector<2x8xf32>
    %69 = vector.multi_reduction <maximumf>, %68, %cst_22 [2] : vector<2x8x8xf32> to vector<2x8xf32>
    %70 = vector.shape_cast %69 : vector<2x8xf32> to vector<2x8x1xf32>
    %71 = vector.broadcast %70 : vector<2x8x1xf32> to vector<2x8x8xf32>
    %72 = arith.subf %68, %71 : vector<2x8x8xf32>
    %73 = math.exp %72 : vector<2x8x8xf32>
    %cst_23 = arith.constant dense<0.000000e+00> : vector<2x8xf32>
    %74 = vector.multi_reduction <add>, %73, %cst_23 [2] : vector<2x8x8xf32> to vector<2x8xf32>
    %75 = vector.shape_cast %74 : vector<2x8xf32> to vector<2x8x1xf32>
    %76 = tpu.reciprocal %75 {approx = true} : vector<2x8x1xf32> -> vector<2x8x1xf32>
    %77 = arith.mulf %75, %76 : vector<2x8x1xf32>
    %cst_24 = arith.constant 2.000000e+00 : f32
    %78 = vector.broadcast %cst_24 : f32 to vector<2x8x1xf32>
    %79 = arith.subf %78, %77 : vector<2x8x1xf32>
    %80 = arith.mulf %76, %79 : vector<2x8x1xf32>
    %81 = vector.broadcast %80 : vector<2x8x1xf32> to vector<2x8x8xf32>
    %82 = arith.mulf %73, %81 : vector<2x8x8xf32>
    "tpu.trace_start"() <{level = 10 : i32, message = "bqk,bkd->bqd"}> : () -> ()
    %cst_25 = arith.constant dense<0.000000e+00> : vector<2x8x8xf32>
    %83 = tpu.matmul %82, %67, %cst_25 {dimension_numbers = #tpu.dot_dimension_numbers<[2], [1], [1], [2], [0, 0, 0, 1, 1, 2], [0], [0]>} : vector<2x8x8xf32>, vector<2x8x8xf32>, vector<2x8x8xf32> -> vector<2x8x8xf32>
    "tpu.trace_stop"() : () -> ()
    %84 = tpu.concatenate %26, %45, %64, %83 in 2 : vector<2x8x8xf32>, vector<2x8x8xf32>, vector<2x8x8xf32>, vector<2x8x8xf32> -> vector<2x8x32xf32>
    %c0_26 = arith.constant 0 : index
    %c0_27 = arith.constant 0 : index
    %c0_28 = arith.constant 0 : index
    %85 = vector.load %arg4[%c0_26, %c0_27, %c0_28] : memref<2x8x32xf32, #tpu.memory_space<vmem>>, vector<2x8x32xf32>
    tpu.vector_store %arg4[%c0_26, %c0_27, %c0_28], %84 {strides = array<i32>} : memref<2x8x32xf32, #tpu.memory_space<vmem>>, vector<2x8x32xf32>,
    return
  }
  func.func @transform_0(%arg0: i32) -> (i32, i32, i32) {
    %c0_i32 = arith.constant 0 : i32
    %c0_i32_0 = arith.constant 0 : i32
    %c0_i32_1 = arith.constant 0 : i32
    return %arg0, %c0_i32, %c0_i32_0 : i32, i32, i32
  }
  func.func @transform_1(%arg0: i32) -> (i32, i32) {
    %c0_i32 = arith.constant 0 : i32
    %c0_i32_0 = arith.constant 0 : i32
    %c0_i32_1 = arith.constant 0 : i32
    return %c0_i32, %c0_i32_0 : i32, i32
  }
  func.func @transform_2(%arg0: i32) -> (i32, i32) {
    %c0_i32 = arith.constant 0 : i32
    %c0_i32_0 = arith.constant 0 : i32
    %c0_i32_1 = arith.constant 0 : i32
    return %c0_i32, %c0_i32_0 : i32, i32
  }
  func.func @transform_3(%arg0: i32) -> (i32, i32, i32) {
    %c0_i32 = arith.constant 0 : i32
    %c0_i32_0 = arith.constant 0 : i32
    %c0_i32_1 = arith.constant 0 : i32
    return %arg0, %c0_i32, %c0_i32_0 : i32, i32, i32
  }
}

</mosaic_0001>

<llo_original>
// kernel: tpu_custom_call.1
$region0: #{tpu_custom_call.1}
  #allocation0 [shape = 'u32[]', space=smem, size = 0x4, offset = 0x4, fixed_abs, tag = 'smem constant byte address 0x4 - core index']
  #allocation1 [shape = 'u32[144,128]{1,0:T(1,128)}', space=vmem, size = 0x12000, scoped, tag = 'internal scratch']
  %s0 = inlined_call_operand.hbm [shape: f32[2,8,32], index: 0, kind: input, shape index: {}]
  %s1 = inlined_call_operand.hbm [shape: f32[32,96], index: 1, kind: input, shape index: {}]
  %s2 = inlined_call_operand.vmem [shape: f32[1,96], index: 2, kind: input, shape index: {}]
  %s3 = inlined_call_operand.hbm [shape: f32[2,8,32], index: 3, kind: output, shape index: {}]
  %s4 = sld [smem:[#allocation0]]
  $region30: #{tpu_custom_call.1} parent=0
    _
  %s6 = ssub.s32 1, %s4
  %s7 = scalar_select 0, %s6, %s4
  $region1: #{tpu_custom_call.1} parent=0
    #allocation2 [shape = 'u8[8192]{0}', space=vmem, size = 0x2000, scoped, tag = 'input window, operand 0, single buffered']
    #allocation3 [shape = 's32[1]{0}', space=sflag, size = 0x4, scoped, tag = 'scoped memory for tpu_custom_call.1']
    #allocation4 [shape = 's32[1]{0}', space=sflag, size = 0x4, scoped, tag = 'scoped memory for tpu_custom_call.1']
    #allocation5 [shape = 'u8[16384]{0}', space=vmem, size = 0x4000, scoped, tag = 'input window, operand 1, single buffered']
    #allocation6 [shape = 's32[1]{0}', space=sflag, size = 0x4, scoped, tag = 'scoped memory for tpu_custom_call.1']
    #allocation7 [shape = 'u8[8192]{0}', space=vmem, size = 0x2000, scoped, tag = 'output window, operand 0, single buffered']
    %8 = vsyncpa [#allocation3], 0
    %9 = vsyncpa [#allocation6], 0
    %10 = vsyncpa [#allocation4], 0
    // Predicated region
    $region2: #{tpu_custom_call.1} parent=1 // pred_check
      _
    $region3: #{tpu_custom_call.1} parent=1 // pred_check_branch
      %12 = sbr.rel (0) target = $region5
    $region4: #{tpu_custom_call.1} parent=1 // pred_region
      %s14 = ssub.s32 256, 256
      %15 = vsyncadd [#allocation3], %s14
      %s16 = sshll.u32 [#allocation2], 4
      %s17 = int_to_ptr.vmem [resolvable:$true] %s16
      %22 = dma.hbm_to_vmem [thread:$0]  %s0, 256, %s17, [#allocation3], 128, 128, 8
    $region5: #{tpu_custom_call.1} parent=1 // pred_fallthru
      _
    // Predicated region
    $region6: #{tpu_custom_call.1} parent=1 // pred_check
      _
    $region7: #{tpu_custom_call.1} parent=1 // pred_check_branch
      %24 = sbr.rel (0) target = $region9
    $region8: #{tpu_custom_call.1} parent=1 // pred_region
      %s26 = ssub.s32 512, 512
      %27 = vsyncadd [#allocation6], %s26
      %s28 = sshll.u32 [#allocation5], 4
      %s29 = int_to_ptr.vmem [resolvable:$true] %s28
      %34 = dma.hbm_to_vmem [thread:$0]  %s1, 512, %s29, [#allocation6], 128, 128, 8
    $region9: #{tpu_custom_call.1} parent=1 // pred_fallthru
      _
    // Predicated region
    $region10: #{tpu_custom_call.1} parent=1 // pred_check
      _
    $region11: #{tpu_custom_call.1} parent=1 // pred_check_branch
      %36 = sbr.rel (0) target = $region13
    $region12: #{tpu_custom_call.1} parent=1 // pred_region
      _
    $region13: #{tpu_custom_call.1} parent=1 // pred_fallthru
      _
    // Predicated region
    $region14: #{tpu_custom_call.1} parent=1 // pred_check
      _
    $region15: #{tpu_custom_call.1} parent=1 // pred_check_branch
      %38 = sbr.rel (0) target = $region17
    $region16: #{tpu_custom_call.1} parent=1 // pred_region
      %39 = dma.done [#allocation3], 256
    $region17: #{tpu_custom_call.1} parent=1 // pred_fallthru
      _
    // Predicated region
    $region18: #{tpu_custom_call.1} parent=1 // pred_check
      _
    $region19: #{tpu_custom_call.1} parent=1 // pred_check_branch
      %41 = sbr.rel (0) target = $region21
    $region20: #{tpu_custom_call.1} parent=1 // pred_region
      %42 = dma.done [#allocation6], 512
    $region21: #{tpu_custom_call.1} parent=1 // pred_fallthru
      _
    %v43 = vld [vmem:[#allocation2] sm:$0xff]
    %v44 = vld [vmem:[#allocation2 + $0x8] sm:$0xff]
    %v45 = vld [vmem:[#allocation5] sm:$0xff]
    %v46 = vld [vmem:[#allocation5 + $0x8] sm:$0xff]
    %v47 = vld [vmem:[#allocation5 + $0x10] sm:$0xff]
    %v48 = vld [vmem:[#allocation5 + $0x18] sm:$0xff]
    %v49 = vld [vmem:[%s2] sm:$0x1]
    %v51 = vlaneseq
    %v52 = vshrl.u32 %v51, 7
    %v53 = vsub.s32 0, %v52
    %v54 = vrot.slane %v49, %v53
    %vm56 = vcmask 261120
    %v58 = vsel %vm56, %v43, 0
    %v61 = vsel %vm56, %v44, 0
    %63 = vmatprep.subr.mxu0 0.0
    %64 = vmatpush1.msra.mxu0 0.0
    %65 = vmatprep.subr.mxu0 0.0
    %66 = vmatpush1.msra.mxu0 0.0
    %67 = vmatprep.subr.mxu0 0.0
    %68 = vmatpush1.msra.mxu0 0.0
    %69 = vmatprep.subr.mxu0 0.0
    %70 = vmatpush1.msra.mxu0 0.0
    %71 = vmatprep.subr.mxu0 0.0
    %72 = vmatpush1.msra.mxu0 0.0
    %73 = vmatprep.subr.mxu0 0.0
    %74 = vmatpush1.msra.mxu0 0.0
    %75 = vmatprep.subr.mxu0 0.0
    %76 = vmatpush1.msra.mxu0 0.0
    %77 = vmatprep.subr.mxu0 0.0
    %78 = vmatpush1.msra.mxu0 0.0
    %79 = vmatprep.subr.mxu0 0.0
    %80 = vmatpush1.msra.mxu0 0.0
    %81 = vmatprep.subr.mxu0 0.0
    %82 = vmatpush1.msra.mxu0 0.0
    %83 = vmatprep.subr.mxu0 0.0
    %84 = vmatpush1.msra.mxu0 0.0
    %85 = vmatprep.subr.mxu0 0.0
    %86 = vmatpush1.msra.mxu0 0.0
    %87 = vmatprep.subr.mxu0 0.0
    %88 = vmatpush1.msra.mxu0 %v48
    %89 = vmatprep.subr.mxu0 0.0
    %90 = vmatpush1.msra.mxu0 %v47
    %91 = vmatprep.subr.mxu0 0.0
    %92 = vmatpush1.msra.mxu0 %v46
    %93 = vmatprep.subr.mxu0 0.0
    %94 = vmatpush1.msra.mxu0 %v45
    %95 = vmatprep.subr.mxu0 0.0
    %96 = vmatpush2.msra.mxu0 0.0
    %97 = vmatprep.subr.mxu0 0.0
    %98 = vmatpush2.msra.mxu0 0.0
    %99 = vmatprep.subr.mxu0 0.0
    %100 = vmatpush2.msra.mxu0 0.0
    %101 = vmatprep.subr.mxu0 0.0
    %102 = vmatpush2.msra.mxu0 0.0
    %103 = vmatprep.subr.mxu0 0.0
    %104 = vmatpush2.msra.mxu0 0.0
    %105 = vmatprep.subr.mxu0 0.0
    %106 = vmatpush2.msra.mxu0 0.0
    %107 = vmatprep.subr.mxu0 0.0
    %108 = vmatpush2.msra.mxu0 0.0
    %109 = vmatprep.subr.mxu0 0.0
    %110 = vmatpush2.msra.mxu0 0.0
    %111 = vmatprep.subr.mxu0 0.0
    %112 = vmatpush2.msra.mxu0 0.0
    %113 = vmatprep.subr.mxu0 0.0
    %114 = vmatpush2.msra.mxu0 0.0
    %115 = vmatprep.subr.mxu0 0.0
    %116 = vmatpush2.msra.mxu0 0.0
    %117 = vmatprep.subr.mxu0 0.0
    %118 = vmatpush2.msra.mxu0 0.0
    %119 = vmatprep.subr.mxu0 0.0
    %120 = vmatpush2.msra.mxu0 0.0
    %121 = vmatprep.subr.mxu0 0.0
    %122 = vmatpush2.msra.mxu0 0.0
    %123 = vmatprep.subr.mxu0 0.0
    %124 = vmatpush2.msra.mxu0 0.0
    %125 = vmatprep.subr.mxu0 0.0
    %126 = vmatpush2.msra.mxu0 0.0
    %127 = vmatprep.mubr.f32.mxu0 0.0
    %128 = vmatmul.mubr.f32.gmra.mxu0 %v58
    %v129 = vpop.f32.mrf.mxu0
    %v130 = vadd.f32 %v54, %v129
    %v131 = vpop.f32.mrf.mxu0
    %132 = vmatprep.mubr.f32.mxu0 0.0
    %133 = vmatmul.mubr.f32.gmra.mxu0 %v61
    %v134 = vpop.f32.mrf.mxu0
    %v135 = vadd.f32 %v54, %v134
    %v136 = vpop.f32.mrf.mxu0
    %137 = vdwg.mxu0
    %139 = vrot.lane.b32.xlu0 %v130, 96
    %v140 = vpop.permute.xlu0 %139
    %vm141 = vcmask 64512
    %v142 = vsel %vm141, %v130, 0
    %v144 = vsel %vm141, %v140, 0
    %146 = vmatprep.subr.mxu0 0.0
    %147 = vmatpush1.xpose.msra.mxu0 0.0
    %148 = vmatprep.subr.mxu0 0.0
    %149 = vmatpush1.xpose.msra.mxu0 0.0
    %150 = vmatprep.subr.mxu0 0.0
    %151 = vmatpush1.xpose.msra.mxu0 0.0
    %152 = vmatprep.subr.mxu0 0.0
    %153 = vmatpush1.xpose.msra.mxu0 0.0
    %154 = vmatprep.subr.mxu0 0.0
    %155 = vmatpush1.xpose.msra.mxu0 0.0
    %156 = vmatprep.subr.mxu0 0.0
    %157 = vmatpush1.xpose.msra.mxu0 0.0
    %158 = vmatprep.subr.mxu0 0.0
    %159 = vmatpush1.xpose.msra.mxu0 0.0
    %160 = vmatprep.subr.mxu0 0.0
    %161 = vmatpush1.xpose.msra.mxu0 0.0
    %162 = vmatprep.subr.mxu0 0.0
    %163 = vmatpush1.xpose.msra.mxu0 0.0
    %164 = vmatprep.subr.mxu0 0.0
    %165 = vmatpush1.xpose.msra.mxu0 0.0
    %166 = vmatprep.subr.mxu0 0.0
    %167 = vmatpush1.xpose.msra.mxu0 0.0
    %168 = vmatprep.subr.mxu0 0.0
    %169 = vmatpush1.xpose.msra.mxu0 0.0
    %170 = vmatprep.subr.mxu0 0.0
    %171 = vmatpush1.xpose.msra.mxu0 0.0
    %172 = vmatprep.subr.mxu0 0.0
    %173 = vmatpush1.xpose.msra.mxu0 0.0
    %174 = vmatprep.subr.mxu0 0.0
    %175 = vmatpush1.xpose.msra.mxu0 0.0
    %176 = vmatprep.subr.mxu0 0.0
    %177 = vmatpush1.xpose.msra.mxu0 %v144
    %178 = vmatprep.subr.mxu0 0.0
    %179 = vmatpush2.xpose.msra.mxu0 0.0
    %180 = vmatprep.subr.mxu0 0.0
    %181 = vmatpush2.xpose.msra.mxu0 0.0
    %182 = vmatprep.subr.mxu0 0.0
    %183 = vmatpush2.xpose.msra.mxu0 0.0
    %184 = vmatprep.subr.mxu0 0.0
    %185 = vmatpush2.xpose.msra.mxu0 0.0
    %186 = vmatprep.subr.mxu0 0.0
    %187 = vmatpush2.xpose.msra.mxu0 0.0
    %188 = vmatprep.subr.mxu0 0.0
    %189 = vmatpush2.xpose.msra.mxu0 0.0
    %190 = vmatprep.subr.mxu0 0.0
    %191 = vmatpush2.xpose.msra.mxu0 0.0
    %192 = vmatprep.subr.mxu0 0.0
    %193 = vmatpush2.xpose.msra.mxu0 0.0
    %194 = vmatprep.subr.mxu0 0.0
    %195 = vmatpush2.xpose.msra.mxu0 0.0
    %196 = vmatprep.subr.mxu0 0.0
    %197 = vmatpush2.xpose.msra.mxu0 0.0
    %198 = vmatprep.subr.mxu0 0.0
    %199 = vmatpush2.xpose.msra.mxu0 0.0
    %200 = vmatprep.subr.mxu0 0.0
    %201 = vmatpush2.xpose.msra.mxu0 0.0
    %202 = vmatprep.subr.mxu0 0.0
    %203 = vmatpush2.xpose.msra.mxu0 0.0
    %204 = vmatprep.subr.mxu0 0.0
    %205 = vmatpush2.xpose.msra.mxu0 0.0
    %206 = vmatprep.subr.mxu0 0.0
    %207 = vmatpush2.xpose.msra.mxu0 0.0
    %208 = vmatprep.subr.mxu0 0.0
    %209 = vmatpush2.xpose.msra.mxu0 0.0
    %210 = vmatprep.mubr.f32.mxu0 0.0
    %211 = vmatmul.mubr.f32.gmra.mxu0 %v142
    %v212 = vpop.f32.mrf.mxu0
    %v213 = vadd.f32 0.0, %v212
    %v214 = vpop.f32.mrf.mxu0
    %215 = vdwg.mxu0
    %217 = vrot.lane.b32.xlu0 %v135, 96
    %v218 = vpop.permute.xlu0 %217
    %v219 = vsel %vm141, %v135, 0
    %v221 = vsel %vm141, %v218, 0
    %223 = vmatprep.subr.mxu0 0.0
    %224 = vmatpush1.xpose.msra.mxu0 0.0
    %225 = vmatprep.subr.mxu0 0.0
    %226 = vmatpush1.xpose.msra.mxu0 0.0
    %227 = vmatprep.subr.mxu0 0.0
    %228 = vmatpush1.xpose.msra.mxu0 0.0
    %229 = vmatprep.subr.mxu0 0.0
    %230 = vmatpush1.xpose.msra.mxu0 0.0
    %231 = vmatprep.subr.mxu0 0.0
    %232 = vmatpush1.xpose.msra.mxu0 0.0
    %233 = vmatprep.subr.mxu0 0.0
    %234 = vmatpush1.xpose.msra.mxu0 0.0
    %235 = vmatprep.subr.mxu0 0.0
    %236 = vmatpush1.xpose.msra.mxu0 0.0
    %237 = vmatprep.subr.mxu0 0.0
    %238 = vmatpush1.xpose.msra.mxu0 0.0
    %239 = vmatprep.subr.mxu0 0.0
    %240 = vmatpush1.xpose.msra.mxu0 0.0
    %241 = vmatprep.subr.mxu0 0.0
    %242 = vmatpush1.xpose.msra.mxu0 0.0
    %243 = vmatprep.subr.mxu0 0.0
    %244 = vmatpush1.xpose.msra.mxu0 0.0
    %245 = vmatprep.subr.mxu0 0.0
    %246 = vmatpush1.xpose.msra.mxu0 0.0
    %247 = vmatprep.subr.mxu0 0.0
    %248 = vmatpush1.xpose.msra.mxu0 0.0
    %249 = vmatprep.subr.mxu0 0.0
    %250 = vmatpush1.xpose.msra.mxu0 0.0
    %251 = vmatprep.subr.mxu0 0.0
    %252 = vmatpush1.xpose.msra.mxu0 0.0
    %253 = vmatprep.subr.mxu0 0.0
    %254 = vmatpush1.xpose.msra.mxu0 %v221
    %255 = vmatprep.subr.mxu0 0.0
    %256 = vmatpush2.xpose.msra.mxu0 0.0
    %257 = vmatprep.subr.mxu0 0.0
    %258 = vmatpush2.xpose.msra.mxu0 0.0
    %259 = vmatprep.subr.mxu0 0.0
    %260 = vmatpush2.xpose.msra.mxu0 0.0
    %261 = vmatprep.subr.mxu0 0.0
    %262 = vmatpush2.xpose.msra.mxu0 0.0
    %263 = vmatprep.subr.mxu0 0.0
    %264 = vmatpush2.xpose.msra.mxu0 0.0
    %265 = vmatprep.subr.mxu0 0.0
    %266 = vmatpush2.xpose.msra.mxu0 0.0
    %267 = vmatprep.subr.mxu0 0.0
    %268 = vmatpush2.xpose.msra.mxu0 0.0
    %269 = vmatprep.subr.mxu0 0.0
    %270 = vmatpush2.xpose.msra.mxu0 0.0
    %271 = vmatprep.subr.mxu0 0.0
    %272 = vmatpush2.xpose.msra.mxu0 0.0
    %273 = vmatprep.subr.mxu0 0.0
    %274 = vmatpush2.xpose.msra.mxu0 0.0
    %275 = vmatprep.subr.mxu0 0.0
    %276 = vmatpush2.xpose.msra.mxu0 0.0
    %277 = vmatprep.subr.mxu0 0.0
    %278 = vmatpush2.xpose.msra.mxu0 0.0
    %279 = vmatprep.subr.mxu0 0.0
    %280 = vmatpush2.xpose.msra.mxu0 0.0
    %281 = vmatprep.subr.mxu0 0.0
    %282 = vmatpush2.xpose.msra.mxu0 0.0
    %283 = vmatprep.subr.mxu0 0.0
    %284 = vmatpush2.xpose.msra.mxu0 0.0
    %285 = vmatprep.subr.mxu0 0.0
    %286 = vmatpush2.xpose.msra.mxu0 0.0
    %287 = vmatprep.mubr.f32.mxu0 0.0
    %288 = vmatmul.mubr.f32.gmra.mxu0 %v219
    %v289 = vpop.f32.mrf.mxu0
    %v290 = vadd.f32 0.0, %v289
    %v291 = vpop.f32.mrf.mxu0
    %292 = vdwg.mxu0
    %v293 = vsel %vm141, %v213, -inf
    %294 = vmax.xlane.f32.xlu0 %v293
    %v295 = vpop.xlane.xlu0 %294
    %v296 = vsel %vm141, %v290, -inf
    %297 = vmax.xlane.f32.xlu0 %v296
    %v298 = vpop.xlane.xlu0 %297
    %v299 = vsub.f32 %v213, %v295
    %v300 = vsub.f32 %v290, %v298
    %v301 = vmul.f32 %v299, 1.442695
    %v302 = vpow.pop %v301
    %v303 = vmul.f32 %v300, 1.442695
    %v304 = vpow.pop %v303
    %v305 = vsel %vm141, %v302, 0.0
    %306 = vadd.xlane.f32.xlu0 %v305
    %v307 = vpop.xlane.xlu0 %306
    %v308 = vsel %vm141, %v304, 0.0
    %309 = vadd.xlane.f32.xlu0 %v308
    %v310 = vpop.xlane.xlu0 %309
    %v311 = vrcp.pop %v307
    %v312 = vrcp.pop %v310
    %v313 = vmul.f32 %v307, %v311
    %v314 = vmul.f32 %v310, %v312
    %v315 = vsub.f32 2.0, %v313
    %v316 = vsub.f32 2.0, %v314
    %v317 = vmul.f32 %v311, %v315
    %v318 = vmul.f32 %v312, %v316
    %v319 = vmul.f32 %v302, %v317
    %v320 = vmul.f32 %v304, %v318
    %321 = vrot.lane.b32.xlu0 %v130, 64
    %v322 = vpop.permute.xlu0 %321
    %v325 = vsel %vm141, %v319, 0
    %327 = vmatprep.subr.mxu0 0.0
    %328 = vmatpush1.msra.mxu0 0.0
    %329 = vmatprep.subr.mxu0 0.0
    %330 = vmatpush1.msra.mxu0 0.0
    %331 = vmatprep.subr.mxu0 0.0
    %332 = vmatpush1.msra.mxu0 0.0
    %333 = vmatprep.subr.mxu0 0.0
    %334 = vmatpush1.msra.mxu0 0.0
    %335 = vmatprep.subr.mxu0 0.0
    %336 = vmatpush1.msra.mxu0 0.0
    %337 = vmatprep.subr.mxu0 0.0
    %338 = vmatpush1.msra.mxu0 0.0
    %339 = vmatprep.subr.mxu0 0.0
    %340 = vmatpush1.msra.mxu0 0.0
    %341 = vmatprep.subr.mxu0 0.0
    %342 = vmatpush1.msra.mxu0 0.0
    %343 = vmatprep.subr.mxu0 0.0
    %344 = vmatpush1.msra.mxu0 0.0
    %345 = vmatprep.subr.mxu0 0.0
    %346 = vmatpush1.msra.mxu0 0.0
    %347 = vmatprep.subr.mxu0 0.0
    %348 = vmatpush1.msra.mxu0 0.0
    %349 = vmatprep.subr.mxu0 0.0
    %350 = vmatpush1.msra.mxu0 0.0
    %351 = vmatprep.subr.mxu0 0.0
    %352 = vmatpush1.msra.mxu0 0.0
    %353 = vmatprep.subr.mxu0 0.0
    %354 = vmatpush1.msra.mxu0 0.0
    %355 = vmatprep.subr.mxu0 0.0
    %356 = vmatpush1.msra.mxu0 0.0
    %357 = vmatprep.subr.mxu0 0.0
    %358 = vmatpush1.msra.mxu0 %v322
    %359 = vmatprep.subr.mxu0 0.0
    %360 = vmatpush2.msra.mxu0 0.0
    %361 = vmatprep.subr.mxu0 0.0
    %362 = vmatpush2.msra.mxu0 0.0
    %363 = vmatprep.subr.mxu0 0.0
    %364 = vmatpush2.msra.mxu0 0.0
    %365 = vmatprep.subr.mxu0 0.0
    %366 = vmatpush2.msra.mxu0 0.0
    %367 = vmatprep.subr.mxu0 0.0
    %368 = vmatpush2.msra.mxu0 0.0
    %369 = vmatprep.subr.mxu0 0.0
    %370 = vmatpush2.msra.mxu0 0.0
    %371 = vmatprep.subr.mxu0 0.0
    %372 = vmatpush2.msra.mxu0 0.0
    %373 = vmatprep.subr.mxu0 0.0
    %374 = vmatpush2.msra.mxu0 0.0
    %375 = vmatprep.subr.mxu0 0.0
    %376 = vmatpush2.msra.mxu0 0.0
    %377 = vmatprep.subr.mxu0 0.0
    %378 = vmatpush2.msra.mxu0 0.0
    %379 = vmatprep.subr.mxu0 0.0
    %380 = vmatpush2.msra.mxu0 0.0
    %381 = vmatprep.subr.mxu0 0.0
    %382 = vmatpush2.msra.mxu0 0.0
    %383 = vmatprep.subr.mxu0 0.0
    %384 = vmatpush2.msra.mxu0 0.0
    %385 = vmatprep.subr.mxu0 0.0
    %386 = vmatpush2.msra.mxu0 0.0
    %387 = vmatprep.subr.mxu0 0.0
    %388 = vmatpush2.msra.mxu0 0.0
    %389 = vmatprep.subr.mxu0 0.0
    %390 = vmatpush2.msra.mxu0 0.0
    %391 = vmatprep.mubr.f32.mxu0 0.0
    %392 = vmatmul.mubr.f32.gmra.mxu0 %v325
    %v393 = vpop.f32.mrf.mxu0
    %v394 = vadd.f32 0.0, %v393
    %v395 = vpop.f32.mrf.mxu0
    %396 = vdwg.mxu0
    %397 = vrot.lane.b32.xlu0 %v135, 64
    %v398 = vpop.permute.xlu0 %397
    %v401 = vsel %vm141, %v320, 0
    %403 = vmatprep.subr.mxu0 0.0
    %404 = vmatpush1.msra.mxu0 0.0
    %405 = vmatprep.subr.mxu0 0.0
    %406 = vmatpush1.msra.mxu0 0.0
    %407 = vmatprep.subr.mxu0 0.0
    %408 = vmatpush1.msra.mxu0 0.0
    %409 = vmatprep.subr.mxu0 0.0
    %410 = vmatpush1.msra.mxu0 0.0
    %411 = vmatprep.subr.mxu0 0.0
    %412 = vmatpush1.msra.mxu0 0.0
    %413 = vmatprep.subr.mxu0 0.0
    %414 = vmatpush1.msra.mxu0 0.0
    %415 = vmatprep.subr.mxu0 0.0
    %416 = vmatpush1.msra.mxu0 0.0
    %417 = vmatprep.subr.mxu0 0.0
    %418 = vmatpush1.msra.mxu0 0.0
    %419 = vmatprep.subr.mxu0 0.0
    %420 = vmatpush1.msra.mxu0 0.0
    %421 = vmatprep.subr.mxu0 0.0
    %422 = vmatpush1.msra.mxu0 0.0
    %423 = vmatprep.subr.mxu0 0.0
    %424 = vmatpush1.msra.mxu0 0.0
    %425 = vmatprep.subr.mxu0 0.0
    %426 = vmatpush1.msra.mxu0 0.0
    %427 = vmatprep.subr.mxu0 0.0
    %428 = vmatpush1.msra.mxu0 0.0
    %429 = vmatprep.subr.mxu0 0.0
    %430 = vmatpush1.msra.mxu0 0.0
    %431 = vmatprep.subr.mxu0 0.0
    %432 = vmatpush1.msra.mxu0 0.0
    %433 = vmatprep.subr.mxu0 0.0
    %434 = vmatpush1.msra.mxu0 %v398
    %435 = vmatprep.subr.mxu0 0.0
    %436 = vmatpush2.msra.mxu0 0.0
    %437 = vmatprep.subr.mxu0 0.0
    %438 = vmatpush2.msra.mxu0 0.0
    %439 = vmatprep.subr.mxu0 0.0
    %440 = vmatpush2.msra.mxu0 0.0
    %441 = vmatprep.subr.mxu0 0.0
    %442 = vmatpush2.msra.mxu0 0.0
    %443 = vmatprep.subr.mxu0 0.0
    %444 = vmatpush2.msra.mxu0 0.0
    %445 = vmatprep.subr.mxu0 0.0
    %446 = vmatpush2.msra.mxu0 0.0
    %447 = vmatprep.subr.mxu0 0.0
    %448 = vmatpush2.msra.mxu0 0.0
    %449 = vmatprep.subr.mxu0 0.0
    %450 = vmatpush2.msra.mxu0 0.0
    %451 = vmatprep.subr.mxu0 0.0
    %452 = vmatpush2.msra.mxu0 0.0
    %453 = vmatprep.subr.mxu0 0.0
    %454 = vmatpush2.msra.mxu0 0.0
    %455 = vmatprep.subr.mxu0 0.0
    %456 = vmatpush2.msra.mxu0 0.0
    %457 = vmatprep.subr.mxu0 0.0
    %458 = vmatpush2.msra.mxu0 0.0
    %459 = vmatprep.subr.mxu0 0.0
    %460 = vmatpush2.msra.mxu0 0.0
    %461 = vmatprep.subr.mxu0 0.0
    %462 = vmatpush2.msra.mxu0 0.0
    %463 = vmatprep.subr.mxu0 0.0
    %464 = vmatpush2.msra.mxu0 0.0
    %465 = vmatprep.subr.mxu0 0.0
    %466 = vmatpush2.msra.mxu0 0.0
    %467 = vmatprep.mubr.f32.mxu0 0.0
    %468 = vmatmul.mubr.f32.gmra.mxu0 %v401
    %v469 = vpop.f32.mrf.mxu0
    %v470 = vadd.f32 0.0, %v469
    %v471 = vpop.f32.mrf.mxu0
    %472 = vdwg.mxu0
    %473 = vrot.lane.b32.xlu0 %v130, 120
    %v474 = vpop.permute.xlu0 %473
    %475 = vrot.lane.b32.xlu0 %v130, 88
    %v476 = vpop.permute.xlu0 %475
    %v477 = vsel %vm141, %v474, 0
    %v479 = vsel %vm141, %v476, 0
    %481 = vmatprep.subr.mxu0 0.0
    %482 = vmatpush1.xpose.msra.mxu0 0.0
    %483 = vmatprep.subr.mxu0 0.0
    %484 = vmatpush1.xpose.msra.mxu0 0.0
    %485 = vmatprep.subr.mxu0 0.0
    %486 = vmatpush1.xpose.msra.mxu0 0.0
    %487 = vmatprep.subr.mxu0 0.0
    %488 = vmatpush1.xpose.msra.mxu0 0.0
    %489 = vmatprep.subr.mxu0 0.0
    %490 = vmatpush1.xpose.msra.mxu0 0.0
    %491 = vmatprep.subr.mxu0 0.0
    %492 = vmatpush1.xpose.msra.mxu0 0.0
    %493 = vmatprep.subr.mxu0 0.0
    %494 = vmatpush1.xpose.msra.mxu0 0.0
    %495 = vmatprep.subr.mxu0 0.0
    %496 = vmatpush1.xpose.msra.mxu0 0.0
    %497 = vmatprep.subr.mxu0 0.0
    %498 = vmatpush1.xpose.msra.mxu0 0.0
    %499 = vmatprep.subr.mxu0 0.0
    %500 = vmatpush1.xpose.msra.mxu0 0.0
    %501 = vmatprep.subr.mxu0 0.0
    %502 = vmatpush1.xpose.msra.mxu0 0.0
    %503 = vmatprep.subr.mxu0 0.0
    %504 = vmatpush1.xpose.msra.mxu0 0.0
    %505 = vmatprep.subr.mxu0 0.0
    %506 = vmatpush1.xpose.msra.mxu0 0.0
    %507 = vmatprep.subr.mxu0 0.0
    %508 = vmatpush1.xpose.msra.mxu0 0.0
    %509 = vmatprep.subr.mxu0 0.0
    %510 = vmatpush1.xpose.msra.mxu0 0.0
    %511 = vmatprep.subr.mxu0 0.0
    %512 = vmatpush1.xpose.msra.mxu0 %v479
    %513 = vmatprep.subr.mxu0 0.0
    %514 = vmatpush2.xpose.msra.mxu0 0.0
    %515 = vmatprep.subr.mxu0 0.0
    %516 = vmatpush2.xpose.msra.mxu0 0.0
    %517 = vmatprep.subr.mxu0 0.0
    %518 = vmatpush2.xpose.msra.mxu0 0.0
    %519 = vmatprep.subr.mxu0 0.0
    %520 = vmatpush2.xpose.msra.mxu0 0.0
    %521 = vmatprep.subr.mxu0 0.0
    %522 = vmatpush2.xpose.msra.mxu0 0.0
    %523 = vmatprep.subr.mxu0 0.0
    %524 = vmatpush2.xpose.msra.mxu0 0.0
    %525 = vmatprep.subr.mxu0 0.0
    %526 = vmatpush2.xpose.msra.mxu0 0.0
    %527 = vmatprep.subr.mxu0 0.0
    %528 = vmatpush2.xpose.msra.mxu0 0.0
    %529 = vmatprep.subr.mxu0 0.0
    %530 = vmatpush2.xpose.msra.mxu0 0.0
    %531 = vmatprep.subr.mxu0 0.0
    %532 = vmatpush2.xpose.msra.mxu0 0.0
    %533 = vmatprep.subr.mxu0 0.0
    %534 = vmatpush2.xpose.msra.mxu0 0.0
    %535 = vmatprep.subr.mxu0 0.0
    %536 = vmatpush2.xpose.msra.mxu0 0.0
    %537 = vmatprep.subr.mxu0 0.0
    %538 = vmatpush2.xpose.msra.mxu0 0.0
    %539 = vmatprep.subr.mxu0 0.0
    %540 = vmatpush2.xpose.msra.mxu0 0.0
    %541 = vmatprep.subr.mxu0 0.0
    %542 = vmatpush2.xpose.msra.mxu0 0.0
    %543 = vmatprep.subr.mxu0 0.0
    %544 = vmatpush2.xpose.msra.mxu0 0.0
    %545 = vmatprep.mubr.f32.mxu0 0.0
    %546 = vmatmul.mubr.f32.gmra.mxu0 %v477
    %v547 = vpop.f32.mrf.mxu0
    %v548 = vadd.f32 0.0, %v547
    %v549 = vpop.f32.mrf.mxu0
    %550 = vdwg.mxu0
    %551 = vrot.lane.b32.xlu0 %v135, 120
    %v552 = vpop.permute.xlu0 %551
    %553 = vrot.lane.b32.xlu0 %v135, 88
    %v554 = vpop.permute.xlu0 %553
    %v555 = vsel %vm141, %v552, 0
    %v557 = vsel %vm141, %v554, 0
    %559 = vmatprep.subr.mxu0 0.0
    %560 = vmatpush1.xpose.msra.mxu0 0.0
    %561 = vmatprep.subr.mxu0 0.0
    %562 = vmatpush1.xpose.msra.mxu0 0.0
    %563 = vmatprep.subr.mxu0 0.0
    %564 = vmatpush1.xpose.msra.mxu0 0.0
    %565 = vmatprep.subr.mxu0 0.0
    %566 = vmatpush1.xpose.msra.mxu0 0.0
    %567 = vmatprep.subr.mxu0 0.0
    %568 = vmatpush1.xpose.msra.mxu0 0.0
    %569 = vmatprep.subr.mxu0 0.0
    %570 = vmatpush1.xpose.msra.mxu0 0.0
    %571 = vmatprep.subr.mxu0 0.0
    %572 = vmatpush1.xpose.msra.mxu0 0.0
    %573 = vmatprep.subr.mxu0 0.0
    %574 = vmatpush1.xpose.msra.mxu0 0.0
    %575 = vmatprep.subr.mxu0 0.0
    %576 = vmatpush1.xpose.msra.mxu0 0.0
    %577 = vmatprep.subr.mxu0 0.0
    %578 = vmatpush1.xpose.msra.mxu0 0.0
    %579 = vmatprep.subr.mxu0 0.0
    %580 = vmatpush1.xpose.msra.mxu0 0.0
    %581 = vmatprep.subr.mxu0 0.0
    %582 = vmatpush1.xpose.msra.mxu0 0.0
    %583 = vmatprep.subr.mxu0 0.0
    %584 = vmatpush1.xpose.msra.mxu0 0.0
    %585 = vmatprep.subr.mxu0 0.0
    %586 = vmatpush1.xpose.msra.mxu0 0.0
    %587 = vmatprep.subr.mxu0 0.0
    %588 = vmatpush1.xpose.msra.mxu0 0.0
    %589 = vmatprep.subr.mxu0 0.0
    %590 = vmatpush1.xpose.msra.mxu0 %v557
    %591 = vmatprep.subr.mxu0 0.0
    %592 = vmatpush2.xpose.msra.mxu0 0.0
    %593 = vmatprep.subr.mxu0 0.0
    %594 = vmatpush2.xpose.msra.mxu0 0.0
    %595 = vmatprep.subr.mxu0 0.0
    %596 = vmatpush2.xpose.msra.mxu0 0.0
    %597 = vmatprep.subr.mxu0 0.0
    %598 = vmatpush2.xpose.msra.mxu0 0.0
    %599 = vmatprep.subr.mxu0 0.0
    %600 = vmatpush2.xpose.msra.mxu0 0.0
    %601 = vmatprep.subr.mxu0 0.0
    %602 = vmatpush2.xpose.msra.mxu0 0.0
    %603 = vmatprep.subr.mxu0 0.0
    %604 = vmatpush2.xpose.msra.mxu0 0.0
    %605 = vmatprep.subr.mxu0 0.0
    %606 = vmatpush2.xpose.msra.mxu0 0.0
    %607 = vmatprep.subr.mxu0 0.0
    %608 = vmatpush2.xpose.msra.mxu0 0.0
    %609 = vmatprep.subr.mxu0 0.0
    %610 = vmatpush2.xpose.msra.mxu0 0.0
    %611 = vmatprep.subr.mxu0 0.0
    %612 = vmatpush2.xpose.msra.mxu0 0.0
    %613 = vmatprep.subr.mxu0 0.0
    %614 = vmatpush2.xpose.msra.mxu0 0.0
    %615 = vmatprep.subr.mxu0 0.0
    %616 = vmatpush2.xpose.msra.mxu0 0.0
    %617 = vmatprep.subr.mxu0 0.0
    %618 = vmatpush2.xpose.msra.mxu0 0.0
    %619 = vmatprep.subr.mxu0 0.0
    %620 = vmatpush2.xpose.msra.mxu0 0.0
    %621 = vmatprep.subr.mxu0 0.0
    %622 = vmatpush2.xpose.msra.mxu0 0.0
    %623 = vmatprep.mubr.f32.mxu0 0.0
    %624 = vmatmul.mubr.f32.gmra.mxu0 %v555
    %v625 = vpop.f32.mrf.mxu0
    %v626 = vadd.f32 0.0, %v625
    %v627 = vpop.f32.mrf.mxu0
    %628 = vdwg.mxu0
    %v629 = vsel %vm141, %v548, -inf
    %630 = vmax.xlane.f32.xlu0 %v629
    %v631 = vpop.xlane.xlu0 %630
    %v632 = vsel %vm141, %v626, -inf
    %633 = vmax.xlane.f32.xlu0 %v632
    %v634 = vpop.xlane.xlu0 %633
    %v635 = vsub.f32 %v548, %v631
    %v636 = vsub.f32 %v626, %v634
    %v637 = vmul.f32 %v635, 1.442695
    %v638 = vpow.pop %v637
    %v639 = vmul.f32 %v636, 1.442695
    %v640 = vpow.pop %v639
    %v641 = vsel %vm141, %v638, 0.0
    %642 = vadd.xlane.f32.xlu0 %v641
    %v643 = vpop.xlane.xlu0 %642
    %v644 = vsel %vm141, %v640, 0.0
    %645 = vadd.xlane.f32.xlu0 %v644
    %v646 = vpop.xlane.xlu0 %645
    %v647 = vrcp.pop %v643
    %v648 = vrcp.pop %v646
    %v649 = vmul.f32 %v643, %v647
    %v650 = vmul.f32 %v646, %v648
    %v651 = vsub.f32 2.0, %v649
    %v652 = vsub.f32 2.0, %v650
    %v653 = vmul.f32 %v647, %v651
    %v654 = vmul.f32 %v648, %v652
    %v655 = vmul.f32 %v638, %v653
    %v656 = vmul.f32 %v640, %v654
    %657 = vrot.lane.b32.xlu0 %v130, 56
    %v658 = vpop.permute.xlu0 %657
    %v661 = vsel %vm141, %v655, 0
    %663 = vmatprep.subr.mxu0 0.0
    %664 = vmatpush1.msra.mxu0 0.0
    %665 = vmatprep.subr.mxu0 0.0
    %666 = vmatpush1.msra.mxu0 0.0
    %667 = vmatprep.subr.mxu0 0.0
    %668 = vmatpush1.msra.mxu0 0.0
    %669 = vmatprep.subr.mxu0 0.0
    %670 = vmatpush1.msra.mxu0 0.0
    %671 = vmatprep.subr.mxu0 0.0
    %672 = vmatpush1.msra.mxu0 0.0
    %673 = vmatprep.subr.mxu0 0.0
    %674 = vmatpush1.msra.mxu0 0.0
    %675 = vmatprep.subr.mxu0 0.0
    %676 = vmatpush1.msra.mxu0 0.0
    %677 = vmatprep.subr.mxu0 0.0
    %678 = vmatpush1.msra.mxu0 0.0
    %679 = vmatprep.subr.mxu0 0.0
    %680 = vmatpush1.msra.mxu0 0.0
    %681 = vmatprep.subr.mxu0 0.0
    %682 = vmatpush1.msra.mxu0 0.0
    %683 = vmatprep.subr.mxu0 0.0
    %684 = vmatpush1.msra.mxu0 0.0
    %685 = vmatprep.subr.mxu0 0.0
    %686 = vmatpush1.msra.mxu0 0.0
    %687 = vmatprep.subr.mxu0 0.0
    %688 = vmatpush1.msra.mxu0 0.0
    %689 = vmatprep.subr.mxu0 0.0
    %690 = vmatpush1.msra.mxu0 0.0
    %691 = vmatprep.subr.mxu0 0.0
    %692 = vmatpush1.msra.mxu0 0.0
    %693 = vmatprep.subr.mxu0 0.0
    %694 = vmatpush1.msra.mxu0 %v658
    %695 = vmatprep.subr.mxu0 0.0
    %696 = vmatpush2.msra.mxu0 0.0
    %697 = vmatprep.subr.mxu0 0.0
    %698 = vmatpush2.msra.mxu0 0.0
    %699 = vmatprep.subr.mxu0 0.0
    %700 = vmatpush2.msra.mxu0 0.0
    %701 = vmatprep.subr.mxu0 0.0
    %702 = vmatpush2.msra.mxu0 0.0
    %703 = vmatprep.subr.mxu0 0.0
    %704 = vmatpush2.msra.mxu0 0.0
    %705 = vmatprep.subr.mxu0 0.0
    %706 = vmatpush2.msra.mxu0 0.0
    %707 = vmatprep.subr.mxu0 0.0
    %708 = vmatpush2.msra.mxu0 0.0
    %709 = vmatprep.subr.mxu0 0.0
    %710 = vmatpush2.msra.mxu0 0.0
    %711 = vmatprep.subr.mxu0 0.0
    %712 = vmatpush2.msra.mxu0 0.0
    %713 = vmatprep.subr.mxu0 0.0
    %714 = vmatpush2.msra.mxu0 0.0
    %715 = vmatprep.subr.mxu0 0.0
    %716 = vmatpush2.msra.mxu0 0.0
    %717 = vmatprep.subr.mxu0 0.0
    %718 = vmatpush2.msra.mxu0 0.0
    %719 = vmatprep.subr.mxu0 0.0
    %720 = vmatpush2.msra.mxu0 0.0
    %721 = vmatprep.subr.mxu0 0.0
    %722 = vmatpush2.msra.mxu0 0.0
    %723 = vmatprep.subr.mxu0 0.0
    %724 = vmatpush2.msra.mxu0 0.0
    %725 = vmatprep.subr.mxu0 0.0
    %726 = vmatpush2.msra.mxu0 0.0
    %727 = vmatprep.mubr.f32.mxu0 0.0
    %728 = vmatmul.mubr.f32.gmra.mxu0 %v661
    %v729 = vpop.f32.mrf.mxu0
    %v730 = vadd.f32 0.0, %v729
    %v731 = vpop.f32.mrf.mxu0
    %732 = vdwg.mxu0
    %733 = vrot.lane.b32.xlu0 %v135, 56
    %v734 = vpop.permute.xlu0 %733
    %v737 = vsel %vm141, %v656, 0
    %739 = vmatprep.subr.mxu0 0.0
    %740 = vmatpush1.msra.mxu0 0.0
    %741 = vmatprep.subr.mxu0 0.0
    %742 = vmatpush1.msra.mxu0 0.0
    %743 = vmatprep.subr.mxu0 0.0
    %744 = vmatpush1.msra.mxu0 0.0
    %745 = vmatprep.subr.mxu0 0.0
    %746 = vmatpush1.msra.mxu0 0.0
    %747 = vmatprep.subr.mxu0 0.0
    %748 = vmatpush1.msra.mxu0 0.0
    %749 = vmatprep.subr.mxu0 0.0
    %750 = vmatpush1.msra.mxu0 0.0
    %751 = vmatprep.subr.mxu0 0.0
    %752 = vmatpush1.msra.mxu0 0.0
    %753 = vmatprep.subr.mxu0 0.0
    %754 = vmatpush1.msra.mxu0 0.0
    %755 = vmatprep.subr.mxu0 0.0
    %756 = vmatpush1.msra.mxu0 0.0
    %757 = vmatprep.subr.mxu0 0.0
    %758 = vmatpush1.msra.mxu0 0.0
    %759 = vmatprep.subr.mxu0 0.0
    %760 = vmatpush1.msra.mxu0 0.0
    %761 = vmatprep.subr.mxu0 0.0
    %762 = vmatpush1.msra.mxu0 0.0
    %763 = vmatprep.subr.mxu0 0.0
    %764 = vmatpush1.msra.mxu0 0.0
    %765 = vmatprep.subr.mxu0 0.0
    %766 = vmatpush1.msra.mxu0 0.0
    %767 = vmatprep.subr.mxu0 0.0
    %768 = vmatpush1.msra.mxu0 0.0
    %769 = vmatprep.subr.mxu0 0.0
    %770 = vmatpush1.msra.mxu0 %v734
    %771 = vmatprep.subr.mxu0 0.0
    %772 = vmatpush2.msra.mxu0 0.0
    %773 = vmatprep.subr.mxu0 0.0
    %774 = vmatpush2.msra.mxu0 0.0
    %775 = vmatprep.subr.mxu0 0.0
    %776 = vmatpush2.msra.mxu0 0.0
    %777 = vmatprep.subr.mxu0 0.0
    %778 = vmatpush2.msra.mxu0 0.0
    %779 = vmatprep.subr.mxu0 0.0
    %780 = vmatpush2.msra.mxu0 0.0
    %781 = vmatprep.subr.mxu0 0.0
    %782 = vmatpush2.msra.mxu0 0.0
    %783 = vmatprep.subr.mxu0 0.0
    %784 = vmatpush2.msra.mxu0 0.0
    %785 = vmatprep.subr.mxu0 0.0
    %786 = vmatpush2.msra.mxu0 0.0
    %787 = vmatprep.subr.mxu0 0.0
    %788 = vmatpush2.msra.mxu0 0.0
    %789 = vmatprep.subr.mxu0 0.0
    %790 = vmatpush2.msra.mxu0 0.0
    %791 = vmatprep.subr.mxu0 0.0
    %792 = vmatpush2.msra.mxu0 0.0
    %793 = vmatprep.subr.mxu0 0.0
    %794 = vmatpush2.msra.mxu0 0.0
    %795 = vmatprep.subr.mxu0 0.0
    %796 = vmatpush2.msra.mxu0 0.0
    %797 = vmatprep.subr.mxu0 0.0
    %798 = vmatpush2.msra.mxu0 0.0
    %799 = vmatprep.subr.mxu0 0.0
    %800 = vmatpush2.msra.mxu0 0.0
    %801 = vmatprep.subr.mxu0 0.0
    %802 = vmatpush2.msra.mxu0 0.0
    %803 = vmatprep.mubr.f32.mxu0 0.0
    %804 = vmatmul.mubr.f32.gmra.mxu0 %v737
    %v805 = vpop.f32.mrf.mxu0
    %v806 = vadd.f32 0.0, %v805
    %v807 = vpop.f32.mrf.mxu0
    %808 = vdwg.mxu0
    %809 = vrot.lane.b32.xlu0 %v130, 112
    %v810 = vpop.permute.xlu0 %809
    %811 = vrot.lane.b32.xlu0 %v130, 80
    %v812 = vpop.permute.xlu0 %811
    %v813 = vsel %vm141, %v810, 0
    %v815 = vsel %vm141, %v812, 0
    %817 = vmatprep.subr.mxu0 0.0
    %818 = vmatpush1.xpose.msra.mxu0 0.0
    %819 = vmatprep.subr.mxu0 0.0
    %820 = vmatpush1.xpose.msra.mxu0 0.0
    %821 = vmatprep.subr.mxu0 0.0
    %822 = vmatpush1.xpose.msra.mxu0 0.0
    %823 = vmatprep.subr.mxu0 0.0
    %824 = vmatpush1.xpose.msra.mxu0 0.0
    %825 = vmatprep.subr.mxu0 0.0
    %826 = vmatpush1.xpose.msra.mxu0 0.0
    %827 = vmatprep.subr.mxu0 0.0
    %828 = vmatpush1.xpose.msra.mxu0 0.0
    %829 = vmatprep.subr.mxu0 0.0
    %830 = vmatpush1.xpose.msra.mxu0 0.0
    %831 = vmatprep.subr.mxu0 0.0
    %832 = vmatpush1.xpose.msra.mxu0 0.0
    %833 = vmatprep.subr.mxu0 0.0
    %834 = vmatpush1.xpose.msra.mxu0 0.0
    %835 = vmatprep.subr.mxu0 0.0
    %836 = vmatpush1.xpose.msra.mxu0 0.0
    %837 = vmatprep.subr.mxu0 0.0
    %838 = vmatpush1.xpose.msra.mxu0 0.0
    %839 = vmatprep.subr.mxu0 0.0
    %840 = vmatpush1.xpose.msra.mxu0 0.0
    %841 = vmatprep.subr.mxu0 0.0
    %842 = vmatpush1.xpose.msra.mxu0 0.0
    %843 = vmatprep.subr.mxu0 0.0
    %844 = vmatpush1.xpose.msra.mxu0 0.0
    %845 = vmatprep.subr.mxu0 0.0
    %846 = vmatpush1.xpose.msra.mxu0 0.0
    %847 = vmatprep.subr.mxu0 0.0
    %848 = vmatpush1.xpose.msra.mxu0 %v815
    %849 = vmatprep.subr.mxu0 0.0
    %850 = vmatpush2.xpose.msra.mxu0 0.0
    %851 = vmatprep.subr.mxu0 0.0
    %852 = vmatpush2.xpose.msra.mxu0 0.0
    %853 = vmatprep.subr.mxu0 0.0
    %854 = vmatpush2.xpose.msra.mxu0 0.0
    %855 = vmatprep.subr.mxu0 0.0
    %856 = vmatpush2.xpose.msra.mxu0 0.0
    %857 = vmatprep.subr.mxu0 0.0
    %858 = vmatpush2.xpose.msra.mxu0 0.0
    %859 = vmatprep.subr.mxu0 0.0
    %860 = vmatpush2.xpose.msra.mxu0 0.0
    %861 = vmatprep.subr.mxu0 0.0
    %862 = vmatpush2.xpose.msra.mxu0 0.0
    %863 = vmatprep.subr.mxu0 0.0
    %864 = vmatpush2.xpose.msra.mxu0 0.0
    %865 = vmatprep.subr.mxu0 0.0
    %866 = vmatpush2.xpose.msra.mxu0 0.0
    %867 = vmatprep.subr.mxu0 0.0
    %868 = vmatpush2.xpose.msra.mxu0 0.0
    %869 = vmatprep.subr.mxu0 0.0
    %870 = vmatpush2.xpose.msra.mxu0 0.0
    %871 = vmatprep.subr.mxu0 0.0
    %872 = vmatpush2.xpose.msra.mxu0 0.0
    %873 = vmatprep.subr.mxu0 0.0
    %874 = vmatpush2.xpose.msra.mxu0 0.0
    %875 = vmatprep.subr.mxu0 0.0
    %876 = vmatpush2.xpose.msra.mxu0 0.0
    %877 = vmatprep.subr.mxu0 0.0
    %878 = vmatpush2.xpose.msra.mxu0 0.0
    %879 = vmatprep.subr.mxu0 0.0
    %880 = vmatpush2.xpose.msra.mxu0 0.0
    %881 = vmatprep.mubr.f32.mxu0 0.0
    %882 = vmatmul.mubr.f32.gmra.mxu0 %v813
    %v883 = vpop.f32.mrf.mxu0
    %v884 = vadd.f32 0.0, %v883
    %v885 = vpop.f32.mrf.mxu0
    %886 = vdwg.mxu0
    %887 = vrot.lane.b32.xlu0 %v135, 112
    %v888 = vpop.permute.xlu0 %887
    %889 = vrot.lane.b32.xlu0 %v135, 80
    %v890 = vpop.permute.xlu0 %889
    %v891 = vsel %vm141, %v888, 0
    %v893 = vsel %vm141, %v890, 0
    %895 = vmatprep.subr.mxu0 0.0
    %896 = vmatpush1.xpose.msra.mxu0 0.0
    %897 = vmatprep.subr.mxu0 0.0
    %898 = vmatpush1.xpose.msra.mxu0 0.0
    %899 = vmatprep.subr.mxu0 0.0
    %900 = vmatpush1.xpose.msra.mxu0 0.0
    %901 = vmatprep.subr.mxu0 0.0
    %902 = vmatpush1.xpose.msra.mxu0 0.0
    %903 = vmatprep.subr.mxu0 0.0
    %904 = vmatpush1.xpose.msra.mxu0 0.0
    %905 = vmatprep.subr.mxu0 0.0
    %906 = vmatpush1.xpose.msra.mxu0 0.0
    %907 = vmatprep.subr.mxu0 0.0
    %908 = vmatpush1.xpose.msra.mxu0 0.0
    %909 = vmatprep.subr.mxu0 0.0
    %910 = vmatpush1.xpose.msra.mxu0 0.0
    %911 = vmatprep.subr.mxu0 0.0
    %912 = vmatpush1.xpose.msra.mxu0 0.0
    %913 = vmatprep.subr.mxu0 0.0
    %914 = vmatpush1.xpose.msra.mxu0 0.0
    %915 = vmatprep.subr.mxu0 0.0
    %916 = vmatpush1.xpose.msra.mxu0 0.0
    %917 = vmatprep.subr.mxu0 0.0
    %918 = vmatpush1.xpose.msra.mxu0 0.0
    %919 = vmatprep.subr.mxu0 0.0
    %920 = vmatpush1.xpose.msra.mxu0 0.0
    %921 = vmatprep.subr.mxu0 0.0
    %922 = vmatpush1.xpose.msra.mxu0 0.0
    %923 = vmatprep.subr.mxu0 0.0
    %924 = vmatpush1.xpose.msra.mxu0 0.0
    %925 = vmatprep.subr.mxu0 0.0
    %926 = vmatpush1.xpose.msra.mxu0 %v893
    %927 = vmatprep.subr.mxu0 0.0
    %928 = vmatpush2.xpose.msra.mxu0 0.0
    %929 = vmatprep.subr.mxu0 0.0
    %930 = vmatpush2.xpose.msra.mxu0 0.0
    %931 = vmatprep.subr.mxu0 0.0
    %932 = vmatpush2.xpose.msra.mxu0 0.0
    %933 = vmatprep.subr.mxu0 0.0
    %934 = vmatpush2.xpose.msra.mxu0 0.0
    %935 = vmatprep.subr.mxu0 0.0
    %936 = vmatpush2.xpose.msra.mxu0 0.0
    %937 = vmatprep.subr.mxu0 0.0
    %938 = vmatpush2.xpose.msra.mxu0 0.0
    %939 = vmatprep.subr.mxu0 0.0
    %940 = vmatpush2.xpose.msra.mxu0 0.0
    %941 = vmatprep.subr.mxu0 0.0
    %942 = vmatpush2.xpose.msra.mxu0 0.0
    %943 = vmatprep.subr.mxu0 0.0
    %944 = vmatpush2.xpose.msra.mxu0 0.0
    %945 = vmatprep.subr.mxu0 0.0
    %946 = vmatpush2.xpose.msra.mxu0 0.0
    %947 = vmatprep.subr.mxu0 0.0
    %948 = vmatpush2.xpose.msra.mxu0 0.0
    %949 = vmatprep.subr.mxu0 0.0
    %950 = vmatpush2.xpose.msra.mxu0 0.0
    %951 = vmatprep.subr.mxu0 0.0
    %952 = vmatpush2.xpose.msra.mxu0 0.0
    %953 = vmatprep.subr.mxu0 0.0
    %954 = vmatpush2.xpose.msra.mxu0 0.0
    %955 = vmatprep.subr.mxu0 0.0
    %956 = vmatpush2.xpose.msra.mxu0 0.0
    %957 = vmatprep.subr.mxu0 0.0
    %958 = vmatpush2.xpose.msra.mxu0 0.0
    %959 = vmatprep.mubr.f32.mxu0 0.0
    %960 = vmatmul.mubr.f32.gmra.mxu0 %v891
    %v961 = vpop.f32.mrf.mxu0
    %v962 = vadd.f32 0.0, %v961
    %v963 = vpop.f32.mrf.mxu0
    %964 = vdwg.mxu0
    %v965 = vsel %vm141, %v884, -inf
    %966 = vmax.xlane.f32.xlu0 %v965
    %v967 = vpop.xlane.xlu0 %966
    %v968 = vsel %vm141, %v962, -inf
    %969 = vmax.xlane.f32.xlu0 %v968
    %v970 = vpop.xlane.xlu0 %969
    %v971 = vsub.f32 %v884, %v967
    %v972 = vsub.f32 %v962, %v970
    %v973 = vmul.f32 %v971, 1.442695
    %v974 = vpow.pop %v973
    %v975 = vmul.f32 %v972, 1.442695
    %v976 = vpow.pop %v975
    %v977 = vsel %vm141, %v974, 0.0
    %978 = vadd.xlane.f32.xlu0 %v977
    %v979 = vpop.xlane.xlu0 %978
    %v980 = vsel %vm141, %v976, 0.0
    %981 = vadd.xlane.f32.xlu0 %v980
    %v982 = vpop.xlane.xlu0 %981
    %v983 = vrcp.pop %v979
    %v984 = vrcp.pop %v982
    %v985 = vmul.f32 %v979, %v983
    %v986 = vmul.f32 %v982, %v984
    %v987 = vsub.f32 2.0, %v985
    %v988 = vsub.f32 2.0, %v986
    %v989 = vmul.f32 %v983, %v987
    %v990 = vmul.f32 %v984, %v988
    %v991 = vmul.f32 %v974, %v989
    %v992 = vmul.f32 %v976, %v990
    %993 = vrot.lane.b32.xlu0 %v130, 48
    %v994 = vpop.permute.xlu0 %993
    %v997 = vsel %vm141, %v991, 0
    %999 = vmatprep.subr.mxu0 0.0
    %1000 = vmatpush1.msra.mxu0 0.0
    %1001 = vmatprep.subr.mxu0 0.0
    %1002 = vmatpush1.msra.mxu0 0.0
    %1003 = vmatprep.subr.mxu0 0.0
    %1004 = vmatpush1.msra.mxu0 0.0
    %1005 = vmatprep.subr.mxu0 0.0
    %1006 = vmatpush1.msra.mxu0 0.0
    %1007 = vmatprep.subr.mxu0 0.0
    %1008 = vmatpush1.msra.mxu0 0.0
    %1009 = vmatprep.subr.mxu0 0.0
    %1010 = vmatpush1.msra.mxu0 0.0
    %1011 = vmatprep.subr.mxu0 0.0
    %1012 = vmatpush1.msra.mxu0 0.0
    %1013 = vmatprep.subr.mxu0 0.0
    %1014 = vmatpush1.msra.mxu0 0.0
    %1015 = vmatprep.subr.mxu0 0.0
    %1016 = vmatpush1.msra.mxu0 0.0
    %1017 = vmatprep.subr.mxu0 0.0
    %1018 = vmatpush1.msra.mxu0 0.0
    %1019 = vmatprep.subr.mxu0 0.0
    %1020 = vmatpush1.msra.mxu0 0.0
    %1021 = vmatprep.subr.mxu0 0.0
    %1022 = vmatpush1.msra.mxu0 0.0
    %1023 = vmatprep.subr.mxu0 0.0
    %1024 = vmatpush1.msra.mxu0 0.0
    %1025 = vmatprep.subr.mxu0 0.0
    %1026 = vmatpush1.msra.mxu0 0.0
    %1027 = vmatprep.subr.mxu0 0.0
    %1028 = vmatpush1.msra.mxu0 0.0
    %1029 = vmatprep.subr.mxu0 0.0
    %1030 = vmatpush1.msra.mxu0 %v994
    %1031 = vmatprep.subr.mxu0 0.0
    %1032 = vmatpush2.msra.mxu0 0.0
    %1033 = vmatprep.subr.mxu0 0.0
    %1034 = vmatpush2.msra.mxu0 0.0
    %1035 = vmatprep.subr.mxu0 0.0
    %1036 = vmatpush2.msra.mxu0 0.0
    %1037 = vmatprep.subr.mxu0 0.0
    %1038 = vmatpush2.msra.mxu0 0.0
    %1039 = vmatprep.subr.mxu0 0.0
    %1040 = vmatpush2.msra.mxu0 0.0
    %1041 = vmatprep.subr.mxu0 0.0
    %1042 = vmatpush2.msra.mxu0 0.0
    %1043 = vmatprep.subr.mxu0 0.0
    %1044 = vmatpush2.msra.mxu0 0.0
    %1045 = vmatprep.subr.mxu0 0.0
    %1046 = vmatpush2.msra.mxu0 0.0
    %1047 = vmatprep.subr.mxu0 0.0
    %1048 = vmatpush2.msra.mxu0 0.0
    %1049 = vmatprep.subr.mxu0 0.0
    %1050 = vmatpush2.msra.mxu0 0.0
    %1051 = vmatprep.subr.mxu0 0.0
    %1052 = vmatpush2.msra.mxu0 0.0
    %1053 = vmatprep.subr.mxu0 0.0
    %1054 = vmatpush2.msra.mxu0 0.0
    %1055 = vmatprep.subr.mxu0 0.0
    %1056 = vmatpush2.msra.mxu0 0.0
    %1057 = vmatprep.subr.mxu0 0.0
    %1058 = vmatpush2.msra.mxu0 0.0
    %1059 = vmatprep.subr.mxu0 0.0
    %1060 = vmatpush2.msra.mxu0 0.0
    %1061 = vmatprep.subr.mxu0 0.0
    %1062 = vmatpush2.msra.mxu0 0.0
    %1063 = vmatprep.mubr.f32.mxu0 0.0
    %1064 = vmatmul.mubr.f32.gmra.mxu0 %v997
    %v1065 = vpop.f32.mrf.mxu0
    %v1066 = vadd.f32 0.0, %v1065
    %v1067 = vpop.f32.mrf.mxu0
    %1068 = vdwg.mxu0
    %1069 = vrot.lane.b32.xlu0 %v135, 48
    %v1070 = vpop.permute.xlu0 %1069
    %v1073 = vsel %vm141, %v992, 0
    %1075 = vmatprep.subr.mxu0 0.0
    %1076 = vmatpush1.msra.mxu0 0.0
    %1077 = vmatprep.subr.mxu0 0.0
    %1078 = vmatpush1.msra.mxu0 0.0
    %1079 = vmatprep.subr.mxu0 0.0
    %1080 = vmatpush1.msra.mxu0 0.0
    %1081 = vmatprep.subr.mxu0 0.0
    %1082 = vmatpush1.msra.mxu0 0.0
    %1083 = vmatprep.subr.mxu0 0.0
    %1084 = vmatpush1.msra.mxu0 0.0
    %1085 = vmatprep.subr.mxu0 0.0
    %1086 = vmatpush1.msra.mxu0 0.0
    %1087 = vmatprep.subr.mxu0 0.0
    %1088 = vmatpush1.msra.mxu0 0.0
    %1089 = vmatprep.subr.mxu0 0.0
    %1090 = vmatpush1.msra.mxu0 0.0
    %1091 = vmatprep.subr.mxu0 0.0
    %1092 = vmatpush1.msra.mxu0 0.0
    %1093 = vmatprep.subr.mxu0 0.0
    %1094 = vmatpush1.msra.mxu0 0.0
    %1095 = vmatprep.subr.mxu0 0.0
    %1096 = vmatpush1.msra.mxu0 0.0
    %1097 = vmatprep.subr.mxu0 0.0
    %1098 = vmatpush1.msra.mxu0 0.0
    %1099 = vmatprep.subr.mxu0 0.0
    %1100 = vmatpush1.msra.mxu0 0.0
    %1101 = vmatprep.subr.mxu0 0.0
    %1102 = vmatpush1.msra.mxu0 0.0
    %1103 = vmatprep.subr.mxu0 0.0
    %1104 = vmatpush1.msra.mxu0 0.0
    %1105 = vmatprep.subr.mxu0 0.0
    %1106 = vmatpush1.msra.mxu0 %v1070
    %1107 = vmatprep.subr.mxu0 0.0
    %1108 = vmatpush2.msra.mxu0 0.0
    %1109 = vmatprep.subr.mxu0 0.0
    %1110 = vmatpush2.msra.mxu0 0.0
    %1111 = vmatprep.subr.mxu0 0.0
    %1112 = vmatpush2.msra.mxu0 0.0
    %1113 = vmatprep.subr.mxu0 0.0
    %1114 = vmatpush2.msra.mxu0 0.0
    %1115 = vmatprep.subr.mxu0 0.0
    %1116 = vmatpush2.msra.mxu0 0.0
    %1117 = vmatprep.subr.mxu0 0.0
    %1118 = vmatpush2.msra.mxu0 0.0
    %1119 = vmatprep.subr.mxu0 0.0
    %1120 = vmatpush2.msra.mxu0 0.0
    %1121 = vmatprep.subr.mxu0 0.0
    %1122 = vmatpush2.msra.mxu0 0.0
    %1123 = vmatprep.subr.mxu0 0.0
    %1124 = vmatpush2.msra.mxu0 0.0
    %1125 = vmatprep.subr.mxu0 0.0
    %1126 = vmatpush2.msra.mxu0 0.0
    %1127 = vmatprep.subr.mxu0 0.0
    %1128 = vmatpush2.msra.mxu0 0.0
    %1129 = vmatprep.subr.mxu0 0.0
    %1130 = vmatpush2.msra.mxu0 0.0
    %1131 = vmatprep.subr.mxu0 0.0
    %1132 = vmatpush2.msra.mxu0 0.0
    %1133 = vmatprep.subr.mxu0 0.0
    %1134 = vmatpush2.msra.mxu0 0.0
    %1135 = vmatprep.subr.mxu0 0.0
    %1136 = vmatpush2.msra.mxu0 0.0
    %1137 = vmatprep.subr.mxu0 0.0
    %1138 = vmatpush2.msra.mxu0 0.0
    %1139 = vmatprep.mubr.f32.mxu0 0.0
    %1140 = vmatmul.mubr.f32.gmra.mxu0 %v1073
    %v1141 = vpop.f32.mrf.mxu0
    %v1142 = vadd.f32 0.0, %v1141
    %v1143 = vpop.f32.mrf.mxu0
    %1144 = vdwg.mxu0
    %1145 = vrot.lane.b32.xlu0 %v130, 104
    %v1146 = vpop.permute.xlu0 %1145
    %1147 = vrot.lane.b32.xlu0 %v130, 72
    %v1148 = vpop.permute.xlu0 %1147
    %v1149 = vsel %vm141, %v1146, 0
    %v1151 = vsel %vm141, %v1148, 0
    %1153 = vmatprep.subr.mxu0 0.0
    %1154 = vmatpush1.xpose.msra.mxu0 0.0
    %1155 = vmatprep.subr.mxu0 0.0
    %1156 = vmatpush1.xpose.msra.mxu0 0.0
    %1157 = vmatprep.subr.mxu0 0.0
    %1158 = vmatpush1.xpose.msra.mxu0 0.0
    %1159 = vmatprep.subr.mxu0 0.0
    %1160 = vmatpush1.xpose.msra.mxu0 0.0
    %1161 = vmatprep.subr.mxu0 0.0
    %1162 = vmatpush1.xpose.msra.mxu0 0.0
    %1163 = vmatprep.subr.mxu0 0.0
    %1164 = vmatpush1.xpose.msra.mxu0 0.0
    %1165 = vmatprep.subr.mxu0 0.0
    %1166 = vmatpush1.xpose.msra.mxu0 0.0
    %1167 = vmatprep.subr.mxu0 0.0
    %1168 = vmatpush1.xpose.msra.mxu0 0.0
    %1169 = vmatprep.subr.mxu0 0.0
    %1170 = vmatpush1.xpose.msra.mxu0 0.0
    %1171 = vmatprep.subr.mxu0 0.0
    %1172 = vmatpush1.xpose.msra.mxu0 0.0
    %1173 = vmatprep.subr.mxu0 0.0
    %1174 = vmatpush1.xpose.msra.mxu0 0.0
    %1175 = vmatprep.subr.mxu0 0.0
    %1176 = vmatpush1.xpose.msra.mxu0 0.0
    %1177 = vmatprep.subr.mxu0 0.0
    %1178 = vmatpush1.xpose.msra.mxu0 0.0
    %1179 = vmatprep.subr.mxu0 0.0
    %1180 = vmatpush1.xpose.msra.mxu0 0.0
    %1181 = vmatprep.subr.mxu0 0.0
    %1182 = vmatpush1.xpose.msra.mxu0 0.0
    %1183 = vmatprep.subr.mxu0 0.0
    %1184 = vmatpush1.xpose.msra.mxu0 %v1151
    %1185 = vmatprep.subr.mxu0 0.0
    %1186 = vmatpush2.xpose.msra.mxu0 0.0
    %1187 = vmatprep.subr.mxu0 0.0
    %1188 = vmatpush2.xpose.msra.mxu0 0.0
    %1189 = vmatprep.subr.mxu0 0.0
    %1190 = vmatpush2.xpose.msra.mxu0 0.0
    %1191 = vmatprep.subr.mxu0 0.0
    %1192 = vmatpush2.xpose.msra.mxu0 0.0
    %1193 = vmatprep.subr.mxu0 0.0
    %1194 = vmatpush2.xpose.msra.mxu0 0.0
    %1195 = vmatprep.subr.mxu0 0.0
    %1196 = vmatpush2.xpose.msra.mxu0 0.0
    %1197 = vmatprep.subr.mxu0 0.0
    %1198 = vmatpush2.xpose.msra.mxu0 0.0
    %1199 = vmatprep.subr.mxu0 0.0
    %1200 = vmatpush2.xpose.msra.mxu0 0.0
    %1201 = vmatprep.subr.mxu0 0.0
    %1202 = vmatpush2.xpose.msra.mxu0 0.0
    %1203 = vmatprep.subr.mxu0 0.0
    %1204 = vmatpush2.xpose.msra.mxu0 0.0
    %1205 = vmatprep.subr.mxu0 0.0
    %1206 = vmatpush2.xpose.msra.mxu0 0.0
    %1207 = vmatprep.subr.mxu0 0.0
    %1208 = vmatpush2.xpose.msra.mxu0 0.0
    %1209 = vmatprep.subr.mxu0 0.0
    %1210 = vmatpush2.xpose.msra.mxu0 0.0
    %1211 = vmatprep.subr.mxu0 0.0
    %1212 = vmatpush2.xpose.msra.mxu0 0.0
    %1213 = vmatprep.subr.mxu0 0.0
    %1214 = vmatpush2.xpose.msra.mxu0 0.0
    %1215 = vmatprep.subr.mxu0 0.0
    %1216 = vmatpush2.xpose.msra.mxu0 0.0
    %1217 = vmatprep.mubr.f32.mxu0 0.0
    %1218 = vmatmul.mubr.f32.gmra.mxu0 %v1149
    %v1219 = vpop.f32.mrf.mxu0
    %v1220 = vadd.f32 0.0, %v1219
    %v1221 = vpop.f32.mrf.mxu0
    %1222 = vdwg.mxu0
    %1223 = vrot.lane.b32.xlu0 %v135, 104
    %v1224 = vpop.permute.xlu0 %1223
    %1225 = vrot.lane.b32.xlu0 %v135, 72
    %v1226 = vpop.permute.xlu0 %1225
    %v1227 = vsel %vm141, %v1224, 0
    %v1229 = vsel %vm141, %v1226, 0
    %1231 = vmatprep.subr.mxu0 0.0
    %1232 = vmatpush1.xpose.msra.mxu0 0.0
    %1233 = vmatprep.subr.mxu0 0.0
    %1234 = vmatpush1.xpose.msra.mxu0 0.0
    %1235 = vmatprep.subr.mxu0 0.0
    %1236 = vmatpush1.xpose.msra.mxu0 0.0
    %1237 = vmatprep.subr.mxu0 0.0
    %1238 = vmatpush1.xpose.msra.mxu0 0.0
    %1239 = vmatprep.subr.mxu0 0.0
    %1240 = vmatpush1.xpose.msra.mxu0 0.0
    %1241 = vmatprep.subr.mxu0 0.0
    %1242 = vmatpush1.xpose.msra.mxu0 0.0
    %1243 = vmatprep.subr.mxu0 0.0
    %1244 = vmatpush1.xpose.msra.mxu0 0.0
    %1245 = vmatprep.subr.mxu0 0.0
    %1246 = vmatpush1.xpose.msra.mxu0 0.0
    %1247 = vmatprep.subr.mxu0 0.0
    %1248 = vmatpush1.xpose.msra.mxu0 0.0
    %1249 = vmatprep.subr.mxu0 0.0
    %1250 = vmatpush1.xpose.msra.mxu0 0.0
    %1251 = vmatprep.subr.mxu0 0.0
    %1252 = vmatpush1.xpose.msra.mxu0 0.0
    %1253 = vmatprep.subr.mxu0 0.0
    %1254 = vmatpush1.xpose.msra.mxu0 0.0
    %1255 = vmatprep.subr.mxu0 0.0
    %1256 = vmatpush1.xpose.msra.mxu0 0.0
    %1257 = vmatprep.subr.mxu0 0.0
    %1258 = vmatpush1.xpose.msra.mxu0 0.0
    %1259 = vmatprep.subr.mxu0 0.0
    %1260 = vmatpush1.xpose.msra.mxu0 0.0
    %1261 = vmatprep.subr.mxu0 0.0
    %1262 = vmatpush1.xpose.msra.mxu0 %v1229
    %1263 = vmatprep.subr.mxu0 0.0
    %1264 = vmatpush2.xpose.msra.mxu0 0.0
    %1265 = vmatprep.subr.mxu0 0.0
    %1266 = vmatpush2.xpose.msra.mxu0 0.0
    %1267 = vmatprep.subr.mxu0 0.0
    %1268 = vmatpush2.xpose.msra.mxu0 0.0
    %1269 = vmatprep.subr.mxu0 0.0
    %1270 = vmatpush2.xpose.msra.mxu0 0.0
    %1271 = vmatprep.subr.mxu0 0.0
    %1272 = vmatpush2.xpose.msra.mxu0 0.0
    %1273 = vmatprep.subr.mxu0 0.0
    %1274 = vmatpush2.xpose.msra.mxu0 0.0
    %1275 = vmatprep.subr.mxu0 0.0
    %1276 = vmatpush2.xpose.msra.mxu0 0.0
    %1277 = vmatprep.subr.mxu0 0.0
    %1278 = vmatpush2.xpose.msra.mxu0 0.0
    %1279 = vmatprep.subr.mxu0 0.0
    %1280 = vmatpush2.xpose.msra.mxu0 0.0
    %1281 = vmatprep.subr.mxu0 0.0
    %1282 = vmatpush2.xpose.msra.mxu0 0.0
    %1283 = vmatprep.subr.mxu0 0.0
    %1284 = vmatpush2.xpose.msra.mxu0 0.0
    %1285 = vmatprep.subr.mxu0 0.0
    %1286 = vmatpush2.xpose.msra.mxu0 0.0
    %1287 = vmatprep.subr.mxu0 0.0
    %1288 = vmatpush2.xpose.msra.mxu0 0.0
    %1289 = vmatprep.subr.mxu0 0.0
    %1290 = vmatpush2.xpose.msra.mxu0 0.0
    %1291 = vmatprep.subr.mxu0 0.0
    %1292 = vmatpush2.xpose.msra.mxu0 0.0
    %1293 = vmatprep.subr.mxu0 0.0
    %1294 = vmatpush2.xpose.msra.mxu0 0.0
    %1295 = vmatprep.mubr.f32.mxu0 0.0
    %1296 = vmatmul.mubr.f32.gmra.mxu0 %v1227
    %v1297 = vpop.f32.mrf.mxu0
    %v1298 = vadd.f32 0.0, %v1297
    %v1299 = vpop.f32.mrf.mxu0
    %1300 = vdwg.mxu0
    %v1301 = vsel %vm141, %v1220, -inf
    %1302 = vmax.xlane.f32.xlu0 %v1301
    %v1303 = vpop.xlane.xlu0 %1302
    %v1304 = vsel %vm141, %v1298, -inf
    %1305 = vmax.xlane.f32.xlu0 %v1304
    %v1306 = vpop.xlane.xlu0 %1305
    %v1307 = vsub.f32 %v1220, %v1303
    %v1308 = vsub.f32 %v1298, %v1306
    %v1309 = vmul.f32 %v1307, 1.442695
    %v1310 = vpow.pop %v1309
    %v1311 = vmul.f32 %v1308, 1.442695
    %v1312 = vpow.pop %v1311
    %v1313 = vsel %vm141, %v1310, 0.0
    %1314 = vadd.xlane.f32.xlu0 %v1313
    %v1315 = vpop.xlane.xlu0 %1314
    %v1316 = vsel %vm141, %v1312, 0.0
    %1317 = vadd.xlane.f32.xlu0 %v1316
    %v1318 = vpop.xlane.xlu0 %1317
    %v1319 = vrcp.pop %v1315
    %v1320 = vrcp.pop %v1318
    %v1321 = vmul.f32 %v1315, %v1319
    %v1322 = vmul.f32 %v1318, %v1320
    %v1323 = vsub.f32 2.0, %v1321
    %v1324 = vsub.f32 2.0, %v1322
    %v1325 = vmul.f32 %v1319, %v1323
    %v1326 = vmul.f32 %v1320, %v1324
    %v1327 = vmul.f32 %v1310, %v1325
    %v1328 = vmul.f32 %v1312, %v1326
    %1329 = vrot.lane.b32.xlu0 %v130, 40
    %v1330 = vpop.permute.xlu0 %1329
    %v1333 = vsel %vm141, %v1327, 0
    %1335 = vmatprep.subr.mxu0 0.0
    %1336 = vmatpush1.msra.mxu0 0.0
    %1337 = vmatprep.subr.mxu0 0.0
    %1338 = vmatpush1.msra.mxu0 0.0
    %1339 = vmatprep.subr.mxu0 0.0
    %1340 = vmatpush1.msra.mxu0 0.0
    %1341 = vmatprep.subr.mxu0 0.0
    %1342 = vmatpush1.msra.mxu0 0.0
    %1343 = vmatprep.subr.mxu0 0.0
    %1344 = vmatpush1.msra.mxu0 0.0
    %1345 = vmatprep.subr.mxu0 0.0
    %1346 = vmatpush1.msra.mxu0 0.0
    %1347 = vmatprep.subr.mxu0 0.0
    %1348 = vmatpush1.msra.mxu0 0.0
    %1349 = vmatprep.subr.mxu0 0.0
    %1350 = vmatpush1.msra.mxu0 0.0
    %1351 = vmatprep.subr.mxu0 0.0
    %1352 = vmatpush1.msra.mxu0 0.0
    %1353 = vmatprep.subr.mxu0 0.0
    %1354 = vmatpush1.msra.mxu0 0.0
    %1355 = vmatprep.subr.mxu0 0.0
    %1356 = vmatpush1.msra.mxu0 0.0
    %1357 = vmatprep.subr.mxu0 0.0
    %1358 = vmatpush1.msra.mxu0 0.0
    %1359 = vmatprep.subr.mxu0 0.0
    %1360 = vmatpush1.msra.mxu0 0.0
    %1361 = vmatprep.subr.mxu0 0.0
    %1362 = vmatpush1.msra.mxu0 0.0
    %1363 = vmatprep.subr.mxu0 0.0
    %1364 = vmatpush1.msra.mxu0 0.0
    %1365 = vmatprep.subr.mxu0 0.0
    %1366 = vmatpush1.msra.mxu0 %v1330
    %1367 = vmatprep.subr.mxu0 0.0
    %1368 = vmatpush2.msra.mxu0 0.0
    %1369 = vmatprep.subr.mxu0 0.0
    %1370 = vmatpush2.msra.mxu0 0.0
    %1371 = vmatprep.subr.mxu0 0.0
    %1372 = vmatpush2.msra.mxu0 0.0
    %1373 = vmatprep.subr.mxu0 0.0
    %1374 = vmatpush2.msra.mxu0 0.0
    %1375 = vmatprep.subr.mxu0 0.0
    %1376 = vmatpush2.msra.mxu0 0.0
    %1377 = vmatprep.subr.mxu0 0.0
    %1378 = vmatpush2.msra.mxu0 0.0
    %1379 = vmatprep.subr.mxu0 0.0
    %1380 = vmatpush2.msra.mxu0 0.0
    %1381 = vmatprep.subr.mxu0 0.0
    %1382 = vmatpush2.msra.mxu0 0.0
    %1383 = vmatprep.subr.mxu0 0.0
    %1384 = vmatpush2.msra.mxu0 0.0
    %1385 = vmatprep.subr.mxu0 0.0
    %1386 = vmatpush2.msra.mxu0 0.0
    %1387 = vmatprep.subr.mxu0 0.0
    %1388 = vmatpush2.msra.mxu0 0.0
    %1389 = vmatprep.subr.mxu0 0.0
    %1390 = vmatpush2.msra.mxu0 0.0
    %1391 = vmatprep.subr.mxu0 0.0
    %1392 = vmatpush2.msra.mxu0 0.0
    %1393 = vmatprep.subr.mxu0 0.0
    %1394 = vmatpush2.msra.mxu0 0.0
    %1395 = vmatprep.subr.mxu0 0.0
    %1396 = vmatpush2.msra.mxu0 0.0
    %1397 = vmatprep.subr.mxu0 0.0
    %1398 = vmatpush2.msra.mxu0 0.0
    %1399 = vmatprep.mubr.f32.mxu0 0.0
    %1400 = vmatmul.mubr.f32.gmra.mxu0 %v1333
    %v1401 = vpop.f32.mrf.mxu0
    %v1402 = vadd.f32 0.0, %v1401
    %v1403 = vpop.f32.mrf.mxu0
    %1404 = vdwg.mxu0
    %1405 = vrot.lane.b32.xlu0 %v135, 40
    %v1406 = vpop.permute.xlu0 %1405
    %v1409 = vsel %vm141, %v1328, 0
    %1411 = vmatprep.subr.mxu0 0.0
    %1412 = vmatpush1.msra.mxu0 0.0
    %1413 = vmatprep.subr.mxu0 0.0
    %1414 = vmatpush1.msra.mxu0 0.0
    %1415 = vmatprep.subr.mxu0 0.0
    %1416 = vmatpush1.msra.mxu0 0.0
    %1417 = vmatprep.subr.mxu0 0.0
    %1418 = vmatpush1.msra.mxu0 0.0
    %1419 = vmatprep.subr.mxu0 0.0
    %1420 = vmatpush1.msra.mxu0 0.0
    %1421 = vmatprep.subr.mxu0 0.0
    %1422 = vmatpush1.msra.mxu0 0.0
    %1423 = vmatprep.subr.mxu0 0.0
    %1424 = vmatpush1.msra.mxu0 0.0
    %1425 = vmatprep.subr.mxu0 0.0
    %1426 = vmatpush1.msra.mxu0 0.0
    %1427 = vmatprep.subr.mxu0 0.0
    %1428 = vmatpush1.msra.mxu0 0.0
    %1429 = vmatprep.subr.mxu0 0.0
    %1430 = vmatpush1.msra.mxu0 0.0
    %1431 = vmatprep.subr.mxu0 0.0
    %1432 = vmatpush1.msra.mxu0 0.0
    %1433 = vmatprep.subr.mxu0 0.0
    %1434 = vmatpush1.msra.mxu0 0.0
    %1435 = vmatprep.subr.mxu0 0.0
    %1436 = vmatpush1.msra.mxu0 0.0
    %1437 = vmatprep.subr.mxu0 0.0
    %1438 = vmatpush1.msra.mxu0 0.0
    %1439 = vmatprep.subr.mxu0 0.0
    %1440 = vmatpush1.msra.mxu0 0.0
    %1441 = vmatprep.subr.mxu0 0.0
    %1442 = vmatpush1.msra.mxu0 %v1406
    %1443 = vmatprep.subr.mxu0 0.0
    %1444 = vmatpush2.msra.mxu0 0.0
    %1445 = vmatprep.subr.mxu0 0.0
    %1446 = vmatpush2.msra.mxu0 0.0
    %1447 = vmatprep.subr.mxu0 0.0
    %1448 = vmatpush2.msra.mxu0 0.0
    %1449 = vmatprep.subr.mxu0 0.0
    %1450 = vmatpush2.msra.mxu0 0.0
    %1451 = vmatprep.subr.mxu0 0.0
    %1452 = vmatpush2.msra.mxu0 0.0
    %1453 = vmatprep.subr.mxu0 0.0
    %1454 = vmatpush2.msra.mxu0 0.0
    %1455 = vmatprep.subr.mxu0 0.0
    %1456 = vmatpush2.msra.mxu0 0.0
    %1457 = vmatprep.subr.mxu0 0.0
    %1458 = vmatpush2.msra.mxu0 0.0
    %1459 = vmatprep.subr.mxu0 0.0
    %1460 = vmatpush2.msra.mxu0 0.0
    %1461 = vmatprep.subr.mxu0 0.0
    %1462 = vmatpush2.msra.mxu0 0.0
    %1463 = vmatprep.subr.mxu0 0.0
    %1464 = vmatpush2.msra.mxu0 0.0
    %1465 = vmatprep.subr.mxu0 0.0
    %1466 = vmatpush2.msra.mxu0 0.0
    %1467 = vmatprep.subr.mxu0 0.0
    %1468 = vmatpush2.msra.mxu0 0.0
    %1469 = vmatprep.subr.mxu0 0.0
    %1470 = vmatpush2.msra.mxu0 0.0
    %1471 = vmatprep.subr.mxu0 0.0
    %1472 = vmatpush2.msra.mxu0 0.0
    %1473 = vmatprep.subr.mxu0 0.0
    %1474 = vmatpush2.msra.mxu0 0.0
    %1475 = vmatprep.mubr.f32.mxu0 0.0
    %1476 = vmatmul.mubr.f32.gmra.mxu0 %v1409
    %v1477 = vpop.f32.mrf.mxu0
    %v1478 = vadd.f32 0.0, %v1477
    %v1479 = vpop.f32.mrf.mxu0
    %1480 = vdwg.mxu0
    %1483 = vrot.lane.b32.xlu0 %v730, 8
    %v1484 = vpop.permute.xlu0 %1483
    %1485 = vrot.lane.b32.xlu0 %v806, 8
    %v1486 = vpop.permute.xlu0 %1485
    %1491 = vrot.lane.b32.xlu0 %v1066, 16
    %v1492 = vpop.permute.xlu0 %1491
    %1493 = vrot.lane.b32.xlu0 %v1142, 16
    %v1494 = vpop.permute.xlu0 %1493
    %1499 = vrot.lane.b32.xlu0 %v1402, 24
    %v1500 = vpop.permute.xlu0 %1499
    %1501 = vrot.lane.b32.xlu0 %v1478, 24
    %v1502 = vpop.permute.xlu0 %1501
    %v1505 = vsel %vm141, %v394, %v1484
    %v1506 = vsel %vm141, %v470, %v1486
    %vm1507 = vcmask 130048
    %v1508 = vsel %vm1507, %v1505, %v1492
    %v1509 = vsel %vm1507, %v1506, %v1494
    %vm1510 = vcmask 195584
    %v1511 = vsel %vm1510, %v1508, %v1500
    %v1512 = vsel %vm1510, %v1509, %v1502
    %1513 = vst.msk [vmem:[#allocation7] sm:$0xff] %vm56, %v1511
    %1514 = vst.msk [vmem:[#allocation7 + $0x8] sm:$0xff] %vm56, %v1512
    // Predicated region
    $region22: #{tpu_custom_call.1} parent=1 // pred_check
      _
    $region23: #{tpu_custom_call.1} parent=1 // pred_check_branch
      %1516 = sbr.rel (0) target = $region25
    $region24: #{tpu_custom_call.1} parent=1 // pred_region
      %s1518 = ssub.s32 256, 256
      %1519 = vsyncadd [#allocation4], %s1518
      %s1520 = sshll.u32 [#allocation7], 4
      %s1521 = int_to_ptr.vmem [resolvable:$true] %s1520
      %1526 = dma.vmem_to_hbm [thread:$0]  %s1521, 256, %s3, [#allocation4], 128, 128, 8
    $region25: #{tpu_custom_call.1} parent=1 // pred_fallthru
      _
    // Predicated region
    $region26: #{tpu_custom_call.1} parent=1 // pred_check
      _
    $region27: #{tpu_custom_call.1} parent=1 // pred_check_branch
      %1528 = sbr.rel (0) target = $region29
    $region28: #{tpu_custom_call.1} parent=1 // pred_region
      %1529 = dma.done [#allocation4], 256
    $region29: #{tpu_custom_call.1} parent=1 // pred_fallthru
      _
    %1530 = vsyncpa [#allocation3], 1
    %1531 = vsyncpa [#allocation6], 1
    %1532 = vsyncpa [#allocation4], 1

</llo_original>
